<compile_context>
chip_gen: v5e
topology: v5e:2x2
jax: 0.10.0
libtpu: 0.0.40
codegen_flags: <defaults>
</compile_context>

<pallas_src>
import jax
import jax.numpy as jnp
from jax.experimental import pallas as pl
from jax.experimental.pallas import tpu as pltpu


def downsample_conv_kernel(x_ref, w_ref, b_ref, o_ref):
    # x_ref: (1, 4, 1, THo+1, Wo+1, Cp)  bf16 -- 4 = (row parity, col parity)
    #        phases of the zero-padded input for this output-row tile
    # w_ref: (3, 3, Cp, TCo)             bf16 HWIO weights (Cout tile)
    # b_ref: (1, TCo)                    f32 bias (Cout tile)
    # o_ref: (1, THo, Wo, TCo)
    _, THo, Wo, TCo = o_ref.shape
    Cp = x_ref.shape[-1]

    # bias folded into the accumulator init (saves one full-tile VPU add)
    acc = jnp.broadcast_to(b_ref[...], (THo * Wo, TCo)).astype(jnp.float32)

    for kh in range(3):              # static 3x3 taps -> fully unrolled
        for kw in range(3):
            ph = (kh % 2) * 2 + (kw % 2)          # which parity phase
            dh, dw = kh // 2, kw // 2             # offset inside the phase
            # slice the ref directly: (THo, Wo, Cp) contiguous window
            patch = x_ref[0, ph, 0, dh:dh + THo, dw:dw + Wo, :]
            patch = patch.reshape(THo * Wo, Cp)
            acc = acc + jnp.dot(patch, w_ref[kh, kw],
                                preferred_element_type=jnp.float32)

    o_ref[...] = acc.reshape(1, THo, Wo, TCo).astype(o_ref.dtype)


def downsample(x_nchw, w_oihw, b):
    """Conv2d(dim, dim, 3, stride=2, padding=1) on NCHW input, via Pallas."""
    N, C, H, W = x_nchw.shape
    Cout = w_oihw.shape[0]
    Ho = (H - 1) // 2 + 1            # = (H + 2*1 - 3)//2 + 1
    Wo = (W - 1) // 2 + 1
    out_dtype = x_nchw.dtype
    out_itemsize = jnp.dtype(out_dtype).itemsize

    LANE = 128
    Cp = -(-C // LANE) * LANE        # padded input channels  (lane-dense matmul K)
    Cop = -(-Cout // LANE) * LANE    # padded output channels (lane-dense stores)

    # ---- Cout tile (no halo needed) ----
    if Cop <= 512:
        TCo = Cop
    elif Cop % 256 == 0:
        TCo = 256
    else:
        TCo = 128
    n_co = Cop // TCo

    # ---- output-row tile (1-row halo on the phase array), ~2 MiB per buffer ----
    bytes_in_per_row = 4 * (Wo + 1) * Cp * 2          # bf16, 4 phases
    bytes_out_per_row = Wo * TCo * out_itemsize
    budget = 2 * 1024 * 1024
    THo = max(1, min(Ho, budget // max(bytes_in_per_row, bytes_out_per_row, 1)))
    n_row_tiles = -(-Ho // THo)
    Ho_pad = n_row_tiles * THo

    # ---- wrapper glue: NCHW -> NHWC, pad, bf16, phase split, row tiles ----
    # pad so every parity phase has exactly (Ho_pad+1) x (Wo+1) rows/cols
    Hp = 2 * (Ho_pad + 1)
    Wp = 2 * (Wo + 1)
    x = jnp.transpose(x_nchw, (0, 2, 3, 1))                       # NHWC
    x = jnp.pad(x, ((0, 0), (1, Hp - 1 - H), (1, Wp - 1 - W), (0, Cp - C)))
    x = x.astype(jnp.bfloat16)
    # phases[n, 2r+c, i, j, :] = x_pad[n, 2i+r, 2j+c, :]
    phases = jnp.stack([x[:, r::2, c::2, :] for r in (0, 1) for c in (0, 1)],
                       axis=1)                                    # (N,4,Ho_pad+1,Wo+1,Cp)
    if n_row_tiles == 1:
        tiles = phases[:, :, None]                                # no halo copy needed
    else:
        tiles = jnp.stack(
            [phases[:, :, t * THo: t * THo + THo + 1]
             for t in range(n_row_tiles)], axis=2)                # (N,4,T,THo+1,Wo+1,Cp)

    w = jnp.transpose(w_oihw, (2, 3, 1, 0))                       # OIHW -> HWIO
    w = jnp.pad(w, ((0, 0), (0, 0), (0, Cp - C), (0, Cop - Cout))).astype(jnp.bfloat16)
    b2 = jnp.pad(b.astype(jnp.float32), (0, Cop - Cout)).reshape(1, Cop)

    out = pl.pallas_call(
        downsample_conv_kernel,
        out_shape=jax.ShapeDtypeStruct((N, Ho_pad, Wo, Cop), out_dtype),
        grid_spec=pltpu.PrefetchScalarGridSpec(
            num_scalar_prefetch=0,
            grid=(N, n_row_tiles, n_co),
            in_specs=[
                pl.BlockSpec((1, 4, 1, THo + 1, Wo + 1, Cp),
                             lambda n, t, co: (n, 0, t, 0, 0, 0)),
                pl.BlockSpec((3, 3, Cp, TCo), lambda n, t, co: (0, 0, 0, co)),
                pl.BlockSpec((1, TCo), lambda n, t, co: (0, co)),
            ],
            out_specs=pl.BlockSpec((1, THo, Wo, TCo),
                                   lambda n, t, co: (n, t, 0, co)),
        ),
        compiler_params=pltpu.CompilerParams(
            dimension_semantics=("parallel", "parallel", "parallel"),
            vmem_limit_bytes=48 * 1024 * 1024),
    )(tiles, w, b2)

    out = out[:, :Ho, :, :Cout]                                   # drop pad rows/chans
    return jnp.transpose(out, (0, 3, 1, 2)).astype(out_dtype)     # back to NCHW


if __name__ == "__main__":
    key = jax.random.PRNGKey(0)
    k_x, k_w, k_b = jax.random.split(key, 3)

    N, dim, H, W = 2, 4, 16, 16
    x = jax.random.normal(k_x, (N, dim, H, W), dtype=jnp.float32)
    # nn.Conv2d(dim, dim, 3): weight (dim, dim, 3, 3), bias (dim,)
    w = jax.random.normal(k_w, (dim, dim, 3, 3), dtype=jnp.float32) * 0.1
    b = jax.random.normal(k_b, (dim,), dtype=jnp.float32) * 0.1

    out = downsample(x, w, b)
    out = jax.block_until_ready(out)

    # reference: XLA conv with identical operand rounding (bf16) and f32 accumulation
    xb = x.astype(jnp.bfloat16).astype(jnp.float32)
    wb = w.astype(jnp.bfloat16).astype(jnp.float32)
    ref = jax.lax.conv_general_dilated(
        xb, wb, window_strides=(2, 2), padding=((1, 1), (1, 1)),
        dimension_numbers=("NCHW", "OIHW", "NCHW")) + b.reshape(1, dim, 1, 1)

    assert out.shape == (N, dim, H // 2, W // 2), out.shape
    err = float(jnp.max(jnp.abs(out - ref)))
    assert err < 1e-2, err
    print("KERNEL_OK")
</pallas_src>

<mosaic_0001>
module attributes {stable_mosaic.version = 11 : i64} {
  func.func @downsample_conv_kernel(%arg0: i32, %arg1: i32, %arg2: i32, %arg3: memref<1x4x1x9x9x128xbf16, #tpu.memory_space<vmem>>, %arg4: memref<3x3x128x128xbf16, #tpu.memory_space<vmem>>, %arg5: memref<1x128xf32, #tpu.memory_space<vmem>>, %arg6: memref<1x8x8x128xf32, #tpu.memory_space<vmem>>) attributes {dimension_semantics = [#tpu.dimension_semantics<parallel>, #tpu.dimension_semantics<parallel>, #tpu.dimension_semantics<parallel>], iteration_bounds = array<i64: 2, 1, 1>, scalar_prefetch = 0 : i64, scratch_operands = 0 : i64, tpu.core_type = #tpu.core_type<tc>, window_params = [{transform_indices = @transform_0, window_bounds = array<i64: 1, 4, 1, 9, 9, 128>}, {transform_indices = @transform_1, window_bounds = array<i64: 3, 3, 128, 128>}, {transform_indices = @transform_2, window_bounds = array<i64: 1, 128>}, {transform_indices = @transform_3, window_bounds = array<i64: 1, 8, 8, 128>}]} {
    %c0 = arith.constant 0 : index
    %c0_0 = arith.constant 0 : index
    %0 = vector.load %arg5[%c0, %c0_0] : memref<1x128xf32, #tpu.memory_space<vmem>>, vector<1x128xf32>
    %1 = vector.shape_cast %0 : vector<1x128xf32> to vector<1x128xf32>
    %2 = vector.broadcast %1 : vector<1x128xf32> to vector<64x128xf32>
    %c0_1 = arith.constant 0 : index
    %c0_2 = arith.constant 0 : index
    %c0_3 = arith.constant 0 : index
    %c0_4 = arith.constant 0 : index
    %c0_5 = arith.constant 0 : index
    %c0_6 = arith.constant 0 : index
    %3 = vector.load %arg3[%c0_1, %c0_2, %c0_3, %c0_4, %c0_5, %c0_6] : memref<1x4x1x9x9x128xbf16, #tpu.memory_space<vmem>>, vector<1x1x1x8x8x128xbf16>
    %4 = vector.shape_cast %3 : vector<1x1x1x8x8x128xbf16> to vector<8x8x128xbf16>
    %5 = vector.shape_cast %4 : vector<8x8x128xbf16> to vector<64x128xbf16>
    %c0_7 = arith.constant 0 : index
    %c0_8 = arith.constant 0 : index
    %c0_9 = arith.constant 0 : index
    %c0_10 = arith.constant 0 : index
    %6 = vector.load %arg4[%c0_7, %c0_8, %c0_9, %c0_10] : memref<3x3x128x128xbf16, #tpu.memory_space<vmem>>, vector<1x1x128x128xbf16>
    %7 = vector.shape_cast %6 : vector<1x1x128x128xbf16> to vector<128x128xbf16>
    %cst = arith.constant dense<0.000000e+00> : vector<64x128xf32>
    %8 = tpu.matmul %5, %7, %cst {dimension_numbers = #tpu.dot_dimension_numbers<[1], [0], [0], [1], [0, 0, 1, 1], [], []>} : vector<64x128xbf16>, vector<128x128xbf16>, vector<64x128xf32> -> vector<64x128xf32>
    %9 = arith.addf %2, %8 : vector<64x128xf32>
    %c0_11 = arith.constant 0 : index
    %c1 = arith.constant 1 : index
    %c0_12 = arith.constant 0 : index
    %c0_13 = arith.constant 0 : index
    %c0_14 = arith.constant 0 : index
    %c0_15 = arith.constant 0 : index
    %10 = vector.load %arg3[%c0_11, %c1, %c0_12, %c0_13, %c0_14, %c0_15] : memref<1x4x1x9x9x128xbf16, #tpu.memory_space<vmem>>, vector<1x1x1x8x8x128xbf16>
    %11 = vector.shape_cast %10 : vector<1x1x1x8x8x128xbf16> to vector<8x8x128xbf16>
    %12 = vector.shape_cast %11 : vector<8x8x128xbf16> to vector<64x128xbf16>
    %c0_16 = arith.constant 0 : index
    %c1_17 = arith.constant 1 : index
    %c0_18 = arith.constant 0 : index
    %c0_19 = arith.constant 0 : index
    %13 = vector.load %arg4[%c0_16, %c1_17, %c0_18, %c0_19] : memref<3x3x128x128xbf16, #tpu.memory_space<vmem>>, vector<1x1x128x128xbf16>
    %14 = vector.shape_cast %13 : vector<1x1x128x128xbf16> to vector<128x128xbf16>
    %cst_20 = arith.constant dense<0.000000e+00> : vector<64x128xf32>
    %15 = tpu.matmul %12, %14, %cst_20 {dimension_numbers = #tpu.dot_dimension_numbers<[1], [0], [0], [1], [0, 0, 1, 1], [], []>} : vector<64x128xbf16>, vector<128x128xbf16>, vector<64x128xf32> -> vector<64x128xf32>
    %16 = arith.addf %9, %15 : vector<64x128xf32>
    %c0_21 = arith.constant 0 : index
    %c0_22 = arith.constant 0 : index
    %c0_23 = arith.constant 0 : index
    %c0_24 = arith.constant 0 : index
    %c1_25 = arith.constant 1 : index
    %c0_26 = arith.constant 0 : index
    %17 = vector.load %arg3[%c0_21, %c0_22, %c0_23, %c0_24, %c1_25, %c0_26] : memref<1x4x1x9x9x128xbf16, #tpu.memory_space<vmem>>, vector<1x1x1x8x8x128xbf16>
    %18 = vector.shape_cast %17 : vector<1x1x1x8x8x128xbf16> to vector<8x8x128xbf16>
    %19 = vector.shape_cast %18 : vector<8x8x128xbf16> to vector<64x128xbf16>
    %c0_27 = arith.constant 0 : index
    %c2 = arith.constant 2 : index
    %c0_28 = arith.constant 0 : index
    %c0_29 = arith.constant 0 : index
    %20 = vector.load %arg4[%c0_27, %c2, %c0_28, %c0_29] : memref<3x3x128x128xbf16, #tpu.memory_space<vmem>>, vector<1x1x128x128xbf16>
    %21 = vector.shape_cast %20 : vector<1x1x128x128xbf16> to vector<128x128xbf16>
    %cst_30 = arith.constant dense<0.000000e+00> : vector<64x128xf32>
    %22 = tpu.matmul %19, %21, %cst_30 {dimension_numbers = #tpu.dot_dimension_numbers<[1], [0], [0], [1], [0, 0, 1, 1], [], []>} : vector<64x128xbf16>, vector<128x128xbf16>, vector<64x128xf32> -> vector<64x128xf32>
    %23 = arith.addf %16, %22 : vector<64x128xf32>
    %c0_31 = arith.constant 0 : index
    %c2_32 = arith.constant 2 : index
    %c0_33 = arith.constant 0 : index
    %c0_34 = arith.constant 0 : index
    %c0_35 = arith.constant 0 : index
    %c0_36 = arith.constant 0 : index
    %24 = vector.load %arg3[%c0_31, %c2_32, %c0_33, %c0_34, %c0_35, %c0_36] : memref<1x4x1x9x9x128xbf16, #tpu.memory_space<vmem>>, vector<1x1x1x8x8x128xbf16>
    %25 = vector.shape_cast %24 : vector<1x1x1x8x8x128xbf16> to vector<8x8x128xbf16>
    %26 = vector.shape_cast %25 : vector<8x8x128xbf16> to vector<64x128xbf16>
    %c1_37 = arith.constant 1 : index
    %c0_38 = arith.constant 0 : index
    %c0_39 = arith.constant 0 : index
    %c0_40 = arith.constant 0 : index
    %27 = vector.load %arg4[%c1_37, %c0_38, %c0_39, %c0_40] : memref<3x3x128x128xbf16, #tpu.memory_space<vmem>>, vector<1x1x128x128xbf16>
    %28 = vector.shape_cast %27 : vector<1x1x128x128xbf16> to vector<128x128xbf16>
    %cst_41 = arith.constant dense<0.000000e+00> : vector<64x128xf32>
    %29 = tpu.matmul %26, %28, %cst_41 {dimension_numbers = #tpu.dot_dimension_numbers<[1], [0], [0], [1], [0, 0, 1, 1], [], []>} : vector<64x128xbf16>, vector<128x128xbf16>, vector<64x128xf32> -> vector<64x128xf32>
    %30 = arith.addf %23, %29 : vector<64x128xf32>
    %c0_42 = arith.constant 0 : index
    %c3 = arith.constant 3 : index
    %c0_43 = arith.constant 0 : index
    %c0_44 = arith.constant 0 : index
    %c0_45 = arith.constant 0 : index
    %c0_46 = arith.constant 0 : index
    %31 = vector.load %arg3[%c0_42, %c3, %c0_43, %c0_44, %c0_45, %c0_46] : memref<1x4x1x9x9x128xbf16, #tpu.memory_space<vmem>>, vector<1x1x1x8x8x128xbf16>
    %32 = vector.shape_cast %31 : vector<1x1x1x8x8x128xbf16> to vector<8x8x128xbf16>
    %33 = vector.shape_cast %32 : vector<8x8x128xbf16> to vector<64x128xbf16>
    %c1_47 = arith.constant 1 : index
    %c1_48 = arith.constant 1 : index
    %c0_49 = arith.constant 0 : index
    %c0_50 = arith.constant 0 : index
    %34 = vector.load %arg4[%c1_47, %c1_48, %c0_49, %c0_50] : memref<3x3x128x128xbf16, #tpu.memory_space<vmem>>, vector<1x1x128x128xbf16>
    %35 = vector.shape_cast %34 : vector<1x1x128x128xbf16> to vector<128x128xbf16>
    %cst_51 = arith.constant dense<0.000000e+00> : vector<64x128xf32>
    %36 = tpu.matmul %33, %35, %cst_51 {dimension_numbers = #tpu.dot_dimension_numbers<[1], [0], [0], [1], [0, 0, 1, 1], [], []>} : vector<64x128xbf16>, vector<128x128xbf16>, vector<64x128xf32> -> vector<64x128xf32>
    %37 = arith.addf %30, %36 : vector<64x128xf32>
    %c0_52 = arith.constant 0 : index
    %c2_53 = arith.constant 2 : index
    %c0_54 = arith.constant 0 : index
    %c0_55 = arith.constant 0 : index
    %c1_56 = arith.constant 1 : index
    %c0_57 = arith.constant 0 : index
    %38 = vector.load %arg3[%c0_52, %c2_53, %c0_54, %c0_55, %c1_56, %c0_57] : memref<1x4x1x9x9x128xbf16, #tpu.memory_space<vmem>>, vector<1x1x1x8x8x128xbf16>
    %39 = vector.shape_cast %38 : vector<1x1x1x8x8x128xbf16> to vector<8x8x128xbf16>
    %40 = vector.shape_cast %39 : vector<8x8x128xbf16> to vector<64x128xbf16>
    %c1_58 = arith.constant 1 : index
    %c2_59 = arith.constant 2 : index
    %c0_60 = arith.constant 0 : index
    %c0_61 = arith.constant 0 : index
    %41 = vector.load %arg4[%c1_58, %c2_59, %c0_60, %c0_61] : memref<3x3x128x128xbf16, #tpu.memory_space<vmem>>, vector<1x1x128x128xbf16>
    %42 = vector.shape_cast %41 : vector<1x1x128x128xbf16> to vector<128x128xbf16>
    %cst_62 = arith.constant dense<0.000000e+00> : vector<64x128xf32>
    %43 = tpu.matmul %40, %42, %cst_62 {dimension_numbers = #tpu.dot_dimension_numbers<[1], [0], [0], [1], [0, 0, 1, 1], [], []>} : vector<64x128xbf16>, vector<128x128xbf16>, vector<64x128xf32> -> vector<64x128xf32>
    %44 = arith.addf %37, %43 : vector<64x128xf32>
    %c0_63 = arith.constant 0 : index
    %c0_64 = arith.constant 0 : index
    %c0_65 = arith.constant 0 : index
    %c1_66 = arith.constant 1 : index
    %c0_67 = arith.constant 0 : index
    %c0_68 = arith.constant 0 : index
    %45 = vector.load %arg3[%c0_63, %c0_64, %c0_65, %c1_66, %c0_67, %c0_68] : memref<1x4x1x9x9x128xbf16, #tpu.memory_space<vmem>>, vector<1x1x1x8x8x128xbf16>
    %46 = vector.shape_cast %45 : vector<1x1x1x8x8x128xbf16> to vector<8x8x128xbf16>
    %47 = vector.shape_cast %46 : vector<8x8x128xbf16> to vector<64x128xbf16>
    %c2_69 = arith.constant 2 : index
    %c0_70 = arith.constant 0 : index
    %c0_71 = arith.constant 0 : index
    %c0_72 = arith.constant 0 : index
    %48 = vector.load %arg4[%c2_69, %c0_70, %c0_71, %c0_72] : memref<3x3x128x128xbf16, #tpu.memory_space<vmem>>, vector<1x1x128x128xbf16>
    %49 = vector.shape_cast %48 : vector<1x1x128x128xbf16> to vector<128x128xbf16>
    %cst_73 = arith.constant dense<0.000000e+00> : vector<64x128xf32>
    %50 = tpu.matmul %47, %49, %cst_73 {dimension_numbers = #tpu.dot_dimension_numbers<[1], [0], [0], [1], [0, 0, 1, 1], [], []>} : vector<64x128xbf16>, vector<128x128xbf16>, vector<64x128xf32> -> vector<64x128xf32>
    %51 = arith.addf %44, %50 : vector<64x128xf32>
    %c0_74 = arith.constant 0 : index
    %c1_75 = arith.constant 1 : index
    %c0_76 = arith.constant 0 : index
    %c1_77 = arith.constant 1 : index
    %c0_78 = arith.constant 0 : index
    %c0_79 = arith.constant 0 : index
    %52 = vector.load %arg3[%c0_74, %c1_75, %c0_76, %c1_77, %c0_78, %c0_79] : memref<1x4x1x9x9x128xbf16, #tpu.memory_space<vmem>>, vector<1x1x1x8x8x128xbf16>
    %53 = vector.shape_cast %52 : vector<1x1x1x8x8x128xbf16> to vector<8x8x128xbf16>
    %54 = vector.shape_cast %53 : vector<8x8x128xbf16> to vector<64x128xbf16>
    %c2_80 = arith.constant 2 : index
    %c1_81 = arith.constant 1 : index
    %c0_82 = arith.constant 0 : index
    %c0_83 = arith.constant 0 : index
    %55 = vector.load %arg4[%c2_80, %c1_81, %c0_82, %c0_83] : memref<3x3x128x128xbf16, #tpu.memory_space<vmem>>, vector<1x1x128x128xbf16>
    %56 = vector.shape_cast %55 : vector<1x1x128x128xbf16> to vector<128x128xbf16>
    %cst_84 = arith.constant dense<0.000000e+00> : vector<64x128xf32>
    %57 = tpu.matmul %54, %56, %cst_84 {dimension_numbers = #tpu.dot_dimension_numbers<[1], [0], [0], [1], [0, 0, 1, 1], [], []>} : vector<64x128xbf16>, vector<128x128xbf16>, vector<64x128xf32> -> vector<64x128xf32>
    %58 = arith.addf %51, %57 : vector<64x128xf32>
    %c0_85 = arith.constant 0 : index
    %c0_86 = arith.constant 0 : index
    %c0_87 = arith.constant 0 : index
    %c1_88 = arith.constant 1 : index
    %c1_89 = arith.constant 1 : index
    %c0_90 = arith.constant 0 : index
    %59 = vector.load %arg3[%c0_85, %c0_86, %c0_87, %c1_88, %c1_89, %c0_90] : memref<1x4x1x9x9x128xbf16, #tpu.memory_space<vmem>>, vector<1x1x1x8x8x128xbf16>
    %60 = vector.shape_cast %59 : vector<1x1x1x8x8x128xbf16> to vector<8x8x128xbf16>
    %61 = vector.shape_cast %60 : vector<8x8x128xbf16> to vector<64x128xbf16>
    %c2_91 = arith.constant 2 : index
    %c2_92 = arith.constant 2 : index
    %c0_93 = arith.constant 0 : index
    %c0_94 = arith.constant 0 : index
    %62 = vector.load %arg4[%c2_91, %c2_92, %c0_93, %c0_94] : memref<3x3x128x128xbf16, #tpu.memory_space<vmem>>, vector<1x1x128x128xbf16>
    %63 = vector.shape_cast %62 : vector<1x1x128x128xbf16> to vector<128x128xbf16>
    %cst_95 = arith.constant dense<0.000000e+00> : vector<64x128xf32>
    %64 = tpu.matmul %61, %63, %cst_95 {dimension_numbers = #tpu.dot_dimension_numbers<[1], [0], [0], [1], [0, 0, 1, 1], [], []>} : vector<64x128xbf16>, vector<128x128xbf16>, vector<64x128xf32> -> vector<64x128xf32>
    %65 = arith.addf %58, %64 : vector<64x128xf32>
    %66 = vector.shape_cast %65 : vector<64x128xf32> to vector<1x8x8x128xf32>
    %c0_96 = arith.constant 0 : index
    %c0_97 = arith.constant 0 : index
    %c0_98 = arith.constant 0 : index
    %c0_99 = arith.constant 0 : index
    %67 = vector.load %arg6[%c0_96, %c0_97, %c0_98, %c0_99] : memref<1x8x8x128xf32, #tpu.memory_space<vmem>>, vector<1x8x8x128xf32>
    tpu.vector_store %arg6[%c0_96, %c0_97, %c0_98, %c0_99], %66 {strides = array<i32>} : memref<1x8x8x128xf32, #tpu.memory_space<vmem>>, vector<1x8x8x128xf32>,
    return
  }
  func.func @transform_0(%arg0: i32, %arg1: i32, %arg2: i32) -> (i32, i32, i32, i32, i32, i32) {
    %c0_i32 = arith.constant 0 : i32
    %c0_i32_0 = arith.constant 0 : i32
    %c0_i32_1 = arith.constant 0 : i32
    %c0_i32_2 = arith.constant 0 : i32
    %c0_i32_3 = arith.constant 0 : i32
    return %arg0, %c0_i32, %arg1, %c0_i32_0, %c0_i32_1, %c0_i32_2 : i32, i32, i32, i32, i32, i32
  }
  func.func @transform_1(%arg0: i32, %arg1: i32, %arg2: i32) -> (i32, i32, i32, i32) {
    %c0_i32 = arith.constant 0 : i32
    %c0_i32_0 = arith.constant 0 : i32
    %c0_i32_1 = arith.constant 0 : i32
    %c0_i32_2 = arith.constant 0 : i32
    return %c0_i32, %c0_i32_0, %c0_i32_1, %arg2 : i32, i32, i32, i32
  }
  func.func @transform_2(%arg0: i32, %arg1: i32, %arg2: i32) -> (i32, i32) {
    %c0_i32 = arith.constant 0 : i32
    %c0_i32_0 = arith.constant 0 : i32
    return %c0_i32, %arg2 : i32, i32
  }
  func.func @transform_3(%arg0: i32, %arg1: i32, %arg2: i32) -> (i32, i32, i32, i32) {
    %c0_i32 = arith.constant 0 : i32
    %c0_i32_0 = arith.constant 0 : i32
    return %arg0, %arg1, %c0_i32, %arg2 : i32, i32, i32, i32
  }
}

</mosaic_0001>

<llo_original>
// kernel: tpu_custom_call.1
$region0: #{tpu_custom_call.1}
  #allocation0 [shape = 'u32[]', space=smem, size = 0x4, offset = 0x4, fixed_abs, tag = 'smem constant byte address 0x4 - core index']
  #allocation1 [shape = 'u32[72,128]{1,0:T(1,128)}', space=vmem, size = 0x9000, scoped, tag = 'internal scratch']
  %s0 = inlined_call_operand.vmem [shape: bf16[2,4,1,9,9,128], index: 0, kind: input, shape index: {}]
  %s1 = inlined_call_operand.vmem [shape: bf16[3,3,128,128], index: 1, kind: input, shape index: {}]
  %s2 = inlined_call_operand.vmem [shape: f32[1,128], index: 2, kind: input, shape index: {}]
  %s3 = inlined_call_operand.hbm [shape: f32[2,8,8,128], index: 3, kind: output, shape index: {}]
  %s4 = sld [smem:[#allocation0]]
  $region45: #{tpu_custom_call.1} parent=0
    _
  %s6 = ssub.s32 1, %s4
  %s7 = scalar_select 0, %s6, %s4
  $region1: #{tpu_custom_call.1} parent=0
    #allocation2 [shape = 'u8[65536]{0}', space=vmem, size = 0x10000, scoped, tag = 'output window, operand 0']
    #allocation3 [shape = 's32[2]{0}', space=sflag, size = 0x8, scoped, tag = 'scoped memory for tpu_custom_call.1']
    %8 = vsyncpa [#allocation3], 0
    %s9 = scalar_lea.sflag [#allocation3], 1
    %10 = vsyncpa %s9, 0
    loop: start=0, step=1, limit=4
    $region2: #{tpu_custom_call.1} parent=1 // loop_pre_header
      _
    $region3: #{tpu_custom_call.1} parent=1 // loop_header
      %s12 = sphi 0, %s16
      %p13 = scmp.ge.s32.totalorder %s12, 4
      %s19 = sphi 0, %s38
      %s20 = sphi 0, %s34
      %s21 = sphi 0, %s30
      %s22 = sphi 0, %s19
      %s23 = sphi 0, %s20
      %s24 = sphi 0, %s21
      %s25 = sphi 0, %s22
      %s26 = sphi 0, %s23
      %s27 = sphi 0, %s24
      %s43 = sphi 0, %s45
      %s46 = sphi 0, %s43
      %s47 = sphi 0, %s46
      %s63 = sphi 0, %s47
      %s69 = sphi 0, %s71
      %s72 = sphi 0, %s69
      %s73 = sphi 0, %s72
      %s89 = sphi 0, %s73
      %s95 = sphi 0, %s97
      %s98 = sphi 0, %s95
      %s99 = sphi 0, %s98
      %s115 = sphi 0, %s99
      %s125 = sphi 0, %s127
      %s128 = sphi 0, %s125
      %s129 = sphi 0, %s128
      %s145 = sphi 0, %s129
    $region4: #{tpu_custom_call.1} parent=1 // loop_header_branch
      %15 = sbr.rel (%p13) target = $region8
    $region5: #{tpu_custom_call.1} parent=1 // loop_body
      %s17 = ssub.s32 %s12, 1
      %s18 = ssub.s32 %s12, 2
      %s28 = sadd.s32 1, %s21
      %p29 = scmp.ge.s32.totalorder %s28, 1
      %s30 = scalar_select %p29, 0, %s28
      %s31 = sadd.s32 1, %s20
      %s32 = scalar_select %p29, %s31, %s20
      %p33 = scmp.ge.s32.totalorder %s32, 1
      %s34 = scalar_select %p33, 0, %s32
      %s35 = sadd.s32 1, %s19
      %s36 = scalar_select %p33, %s35, %s19
      %p37 = scmp.ge.s32.totalorder %s36, 2
      %s38 = scalar_select %p37, 0, %s36
      %s39 = ssub.s32 %s19, %s38
      %s40 = ssub.s32 %s20, %s34
      %s41 = sor.u32 %s39, %s40
      %p42 = scmp.eq.s32.totalorder %s41, 0
      %s44 = sadd.s32 %s43, 1
      %s45 = scalar_select %p42, %s43, %s44
      %p48 = pneg %p42
      %p49 = scmp.eq.s32.totalorder %s12, 1
      %p50 = por %p48, %p49
      %p51 = scmp.ne.s32.totalorder %s43, %s46
      %p52 = scmp.eq.s32.totalorder %s12, 0
      %p53 = por %p51, %p52
      %p54 = scmp.ne.s32.totalorder %s43, %s46
      %p55 = scmp.eq.s32.totalorder %s17, 1
      %p56 = por %p54, %p55
      %p57 = scmp.ne.s32.totalorder %s46, %s47
      %p58 = scmp.eq.s32.totalorder %s17, 0
      %p59 = por %p57, %p58
      %p60 = scmp.ne.s32.totalorder %s46, %s47
      %p61 = scmp.eq.s32.totalorder %s18, 1
      %p62 = por %p60, %p61
      %p64 = scmp.ne.s32.totalorder %s47, %s63
      %p65 = scmp.eq.s32.totalorder %s18, 0
      %p66 = por %p64, %p65
      %s67 = ssub.s32 %s21, %s30
      %p68 = scmp.eq.s32.totalorder %s67, 0
      %s70 = sadd.s32 %s69, 1
      %s71 = scalar_select %p68, %s69, %s70
      %p74 = pneg %p68
      %p75 = scmp.eq.s32.totalorder %s12, 1
      %p76 = por %p74, %p75
      %p77 = scmp.ne.s32.totalorder %s69, %s72
      %p78 = scmp.eq.s32.totalorder %s12, 0
      %p79 = por %p77, %p78
      %p80 = scmp.ne.s32.totalorder %s69, %s72
      %p81 = scmp.eq.s32.totalorder %s17, 1
      %p82 = por %p80, %p81
      %p83 = scmp.ne.s32.totalorder %s72, %s73
      %p84 = scmp.eq.s32.totalorder %s17, 0
      %p85 = por %p83, %p84
      %p86 = scmp.ne.s32.totalorder %s72, %s73
      %p87 = scmp.eq.s32.totalorder %s18, 1
      %p88 = por %p86, %p87
      %p90 = scmp.ne.s32.totalorder %s73, %s89
      %p91 = scmp.eq.s32.totalorder %s18, 0
      %p92 = por %p90, %p91
      %s93 = ssub.s32 %s21, %s30
      %p94 = scmp.eq.s32.totalorder %s93, 0
      %s96 = sadd.s32 %s95, 1
      %s97 = scalar_select %p94, %s95, %s96
      %p100 = pneg %p94
      %p101 = scmp.eq.s32.totalorder %s12, 1
      %p102 = por %p100, %p101
      %p103 = scmp.ne.s32.totalorder %s95, %s98
      %p104 = scmp.eq.s32.totalorder %s12, 0
      %p105 = por %p103, %p104
      %p106 = scmp.ne.s32.totalorder %s95, %s98
      %p107 = scmp.eq.s32.totalorder %s17, 1
      %p108 = por %p106, %p107
      %p109 = scmp.ne.s32.totalorder %s98, %s99
      %p110 = scmp.eq.s32.totalorder %s17, 0
      %p111 = por %p109, %p110
      %p112 = scmp.ne.s32.totalorder %s98, %s99
      %p113 = scmp.eq.s32.totalorder %s18, 1
      %p114 = por %p112, %p113
      %p116 = scmp.ne.s32.totalorder %s99, %s115
      %p117 = scmp.eq.s32.totalorder %s18, 0
      %p118 = por %p116, %p117
      %s119 = ssub.s32 %s19, %s38
      %s120 = ssub.s32 %s20, %s34
      %s121 = sor.u32 %s119, %s120
      %s122 = ssub.s32 %s21, %s30
      %s123 = sor.u32 %s121, %s122
      %p124 = scmp.eq.s32.totalorder %s123, 0
      %s126 = sadd.s32 %s125, 1
      %s127 = scalar_select %p124, %s125, %s126
      %p130 = pneg %p124
      %p131 = scmp.eq.s32.totalorder %s12, 1
      %p132 = por %p130, %p131
      %p133 = scmp.ne.s32.totalorder %s125, %s128
      %p134 = scmp.eq.s32.totalorder %s12, 0
      %p135 = por %p133, %p134
      %p136 = scmp.ne.s32.totalorder %s125, %s128
      %p137 = scmp.eq.s32.totalorder %s17, 1
      %p138 = por %p136, %p137
      %p139 = scmp.ne.s32.totalorder %s128, %s129
      %p140 = scmp.eq.s32.totalorder %s17, 0
      %p141 = por %p139, %p140
      %p142 = scmp.ne.s32.totalorder %s128, %s129
      %p143 = scmp.eq.s32.totalorder %s18, 1
      %p144 = por %p142, %p143
      %p146 = scmp.ne.s32.totalorder %s129, %s145
      %p147 = scmp.eq.s32.totalorder %s18, 0
      %p148 = por %p146, %p147
      %p149 = scmp.le.s32.totalorder 1, %s12
      %p150 = scmp.lt.s32.totalorder %s12, 3
      %p151 = pnand %p149, %p150
      %p152 = pneg %p151
      // Predicated region
      $region9: #{tpu_custom_call.1} parent=5 // pred_check
        _
      $region10: #{tpu_custom_call.1} parent=5 // pred_check_branch
        %154 = sbr.rel (%p151) target = $region12
      $region11: #{tpu_custom_call.1} parent=5 // pred_region
        %s155 = ssub.s32 %s12, 1
        // Predicated region
        $region13: #{tpu_custom_call.1} parent=11 // pred_check
          %p156 = pneg %p85
        $region14: #{tpu_custom_call.1} parent=11 // pred_check_branch
          %158 = sbr.rel (%p156) target = $region16
        $region15: #{tpu_custom_call.1} parent=11 // pred_region
          %p159 = scmp.lt.s32.totalorder %s24, 0
          %s160 = scalar_select %p159, %s24, 0
          %s161 = smul.addr %s160, 4
          %s162 = scalar_lea.vmem %s1, %s161
        $region16: #{tpu_custom_call.1} parent=11 // pred_fallthru
          _
        // Predicated region
        $region17: #{tpu_custom_call.1} parent=11 // pred_check
          %p163 = pneg %p111
        $region18: #{tpu_custom_call.1} parent=11 // pred_check_branch
          %165 = sbr.rel (%p163) target = $region20
        $region19: #{tpu_custom_call.1} parent=11 // pred_region
          %p166 = scmp.lt.s32.totalorder %s24, 0
          %s167 = scalar_select %p166, %s24, 0
          %s168 = scalar_lea.vmem %s2, %s167
        $region20: #{tpu_custom_call.1} parent=11 // pred_fallthru
          _
      $region12: #{tpu_custom_call.1} parent=5 // pred_fallthru
        _
      %p169 = scmp.lt.s32.totalorder %s12, 2
      // Predicated region
      $region21: #{tpu_custom_call.1} parent=5 // pred_check
        %p170 = pneg %p169
      $region22: #{tpu_custom_call.1} parent=5 // pred_check_branch
        %172 = sbr.rel (%p170) target = $region24
      $region23: #{tpu_custom_call.1} parent=5 // pred_region
        // Predicated region
        $region25: #{tpu_custom_call.1} parent=23 // pred_check
          %p173 = pneg %p53
        $region26: #{tpu_custom_call.1} parent=23 // pred_check_branch
          %175 = sbr.rel (%p173) target = $region28
        $region27: #{tpu_custom_call.1} parent=23 // pred_region
          %p176 = scmp.lt.s32.totalorder %s19, 1
          %s177 = scalar_select %p176, %s19, 1
          %p178 = scmp.lt.s32.totalorder %s20, 0
          %s179 = scalar_select %p178, %s20, 0
          %s180 = smul.addr %s179, 18
          %s181 = smul.addr %s177, 72
          %s182 = sadd.s32 %s180, %s181
          %s183 = smul.addr %s182, 4
          %s184 = scalar_lea.vmem %s0, %s183
        $region28: #{tpu_custom_call.1} parent=23 // pred_fallthru
          _
      $region24: #{tpu_custom_call.1} parent=5 // pred_fallthru
        _
      %p185 = scmp.le.s32.totalorder 1, %s12
      %p186 = scmp.lt.s32.totalorder %s12, 3
      %p187 = pnand %p185, %p186
      %p188 = pneg %p187
      // Predicated region
      $region29: #{tpu_custom_call.1} parent=5 // pred_check
        _
      $region30: #{tpu_custom_call.1} parent=5 // pred_check_branch
        %190 = sbr.rel (%p187) target = $region32
      $region31: #{tpu_custom_call.1} parent=5 // pred_region
        %s191 = ssub.s32 %s12, 1
        %p192 = scmp.lt.s32.totalorder %s22, 1
        %s193 = scalar_select %p192, %s22, 1
        %p194 = scmp.lt.s32.totalorder %s23, 0
        %s195 = scalar_select %p194, %s23, 0
        %s196 = smul.addr %s195, 18
        %s197 = smul.addr %s193, 72
        %s198 = sadd.s32 %s196, %s197
        %s199 = smul.addr %s198, 4
        %s200 = scalar_lea.vmem %s0, %s199
        %p201 = pneg %p59
        %p202 = pneg %p56
        %p203 = scmp.lt.s32.totalorder %s24, 0
        %s204 = scalar_select %p203, %s24, 0
        %s205 = smul.addr %s204, 4
        %s206 = scalar_lea.vmem %s1, %s205
        %p207 = pneg %p85
        %p208 = pneg %p82
        %p209 = scmp.lt.s32.totalorder %s24, 0
        %s210 = scalar_select %p209, %s24, 0
        %s211 = scalar_lea.vmem %s2, %s210
        %p212 = pneg %p111
        %p213 = pneg %p108
        %p214 = pneg %p141
        %p215 = pneg %p138
        %s216 = sand.u32 %s128, 1
        %s217 = scalar_lea.sflag [#allocation3], %s216
        %s218 = sand.u32 %s128, 1
        %s219 = smul.addr %s218, 64
        %s220 = scalar_lea.vmem [#allocation2], %s219
        %p221 = scmp.lt.s32.totalorder %s22, 1
        %s222 = scalar_select %p221, %s22, 1
        %p223 = scmp.lt.s32.totalorder %s23, 0
        %s224 = scalar_select %p223, %s23, 0
        %s225 = smul.addr %s224, 18
        %s226 = smul.addr %s222, 72
        %s227 = sadd.s32 %s225, %s226
        %s228 = smul.addr %s227, 4
        %s229 = scalar_lea.vmem %s0, %s228
        %p230 = scmp.lt.s32.totalorder %s24, 0
        %s231 = scalar_select %p230, %s24, 0
        %s232 = smul.addr %s231, 4
        %s233 = scalar_lea.vmem %s1, %s232
        %p234 = scmp.lt.s32.totalorder %s24, 0
        %s235 = scalar_select %p234, %s24, 0
        %s236 = scalar_lea.vmem %s2, %s235
        %s237 = smul.u32 8, %s23
        %v238 = vld [vmem:[%s236] sm:$0x1]
        %v240 = vperm.slane %v238, 0
        %v242 = vld [vmem:[%s229] sm:$0xf]
        %v243 = vld [vmem:[%s229 + $0x8] sm:$0xf]
        %v244 = vld [vmem:[%s229 + $0x10] sm:$0xf]
        %v245 = vld [vmem:[%s229 + $0x18] sm:$0xf]
        %v246 = vld [vmem:[%s229 + $0x20] sm:$0xf]
        %v247 = vld [vmem:[%s229 + $0x28] sm:$0xf]
        %v248 = vld [vmem:[%s229 + $0x30] sm:$0xf]
        %v249 = vld [vmem:[%s229 + $0x38] sm:$0xf]
        %v250 = vld [vmem:[%s233] sm:$0xf]
        %v251 = vld [vmem:[%s233 + $0x4] sm:$0xf]
        %v252 = vld [vmem:[%s233 + $0x8] sm:$0xf]
        %v253 = vld [vmem:[%s233 + $0xc] sm:$0xf]
        %v254 = vld [vmem:[%s233 + $0x10] sm:$0xf]
        %v255 = vld [vmem:[%s233 + $0x14] sm:$0xf]
        %v256 = vld [vmem:[%s233 + $0x18] sm:$0xf]
        %v257 = vld [vmem:[%s233 + $0x1c] sm:$0xf]
        %v258 = vld [vmem:[%s233 + $0x20] sm:$0xf]
        %v259 = vld [vmem:[%s233 + $0x24] sm:$0xf]
        %v260 = vld [vmem:[%s233 + $0x28] sm:$0xf]
        %v261 = vld [vmem:[%s233 + $0x2c] sm:$0xf]
        %v262 = vld [vmem:[%s233 + $0x30] sm:$0xf]
        %v263 = vld [vmem:[%s233 + $0x34] sm:$0xf]
        %v264 = vld [vmem:[%s233 + $0x38] sm:$0xf]
        %v265 = vld [vmem:[%s233 + $0x3c] sm:$0xf]
        %v274 = vunpack.c.l.b16 %v242
        %v275 = vunpack.c.l.b16 %v243
        %v276 = vunpack.c.l.b16 %v244
        %v277 = vunpack.c.l.b16 %v245
        %v278 = vunpack.c.l.b16 %v246
        %v279 = vunpack.c.l.b16 %v247
        %v280 = vunpack.c.l.b16 %v248
        %v281 = vunpack.c.l.b16 %v249
        %v282 = vpack.c.b16 %v275, %v274
        %v283 = vpack.c.b16 %v277, %v276
        %v284 = vpack.c.b16 %v279, %v278
        %v285 = vpack.c.b16 %v281, %v280
        %v306 = vunpack.c.l.b16 %v250
        %v307 = vunpack.c.l.b16 %v251
        %v308 = vunpack.c.l.b16 %v252
        %v309 = vunpack.c.l.b16 %v253
        %v310 = vunpack.c.l.b16 %v254
        %v311 = vunpack.c.l.b16 %v255
        %v312 = vunpack.c.l.b16 %v256
        %v313 = vunpack.c.l.b16 %v257
        %v314 = vunpack.c.l.b16 %v258
        %v315 = vunpack.c.l.b16 %v259
        %v316 = vunpack.c.l.b16 %v260
        %v317 = vunpack.c.l.b16 %v261
        %v318 = vunpack.c.l.b16 %v262
        %v319 = vunpack.c.l.b16 %v263
        %v320 = vunpack.c.l.b16 %v264
        %v321 = vunpack.c.l.b16 %v265
        %v322 = vpack.c.b16 %v307, %v306
        %v323 = vpack.c.b16 %v309, %v308
        %v324 = vpack.c.b16 %v311, %v310
        %v325 = vpack.c.b16 %v313, %v312
        %v326 = vpack.c.b16 %v315, %v314
        %v327 = vpack.c.b16 %v317, %v316
        %v328 = vpack.c.b16 %v319, %v318
        %v329 = vpack.c.b16 %v321, %v320
        %338 = vmatpush.bf16.msra.mxu0 %v329
        %339 = vmatpush.bf16.msra.mxu0 %v328
        %340 = vmatpush.bf16.msra.mxu0 %v327
        %341 = vmatpush.bf16.msra.mxu0 %v326
        %342 = vmatpush.bf16.msra.mxu0 %v325
        %343 = vmatpush.bf16.msra.mxu0 %v324
        %344 = vmatpush.bf16.msra.mxu0 %v323
        %345 = vmatpush.bf16.msra.mxu0 %v322
        %346 = vmatmul.bf16.gmra.mxu0 %v282
        %v347 = vpop.f32.mrf.mxu0
        %v348 = vadd.f32 0.0, %v347
        %v349 = vpop.f32.mrf.mxu0
        %v350 = vadd.f32 0.0, %v349
        %351 = vmatmul.bf16.gmra.mxu0 %v283
        %v352 = vpop.f32.mrf.mxu0
        %v353 = vadd.f32 0.0, %v352
        %v354 = vpop.f32.mrf.mxu0
        %v355 = vadd.f32 0.0, %v354
        %356 = vmatmul.bf16.gmra.mxu0 %v284
        %v357 = vpop.f32.mrf.mxu0
        %v358 = vadd.f32 0.0, %v357
        %v359 = vpop.f32.mrf.mxu0
        %v360 = vadd.f32 0.0, %v359
        %361 = vmatmul.bf16.gmra.mxu0 %v285
        %v362 = vpop.f32.mrf.mxu0
        %v363 = vadd.f32 0.0, %v362
        %v364 = vpop.f32.mrf.mxu0
        %v365 = vadd.f32 0.0, %v364
        %366 = vdwg.mxu0
        %v367 = vadd.f32 %v240, %v348
        %v368 = vadd.f32 %v240, %v350
        %v369 = vadd.f32 %v240, %v353
        %v370 = vadd.f32 %v240, %v355
        %v371 = vadd.f32 %v240, %v358
        %v372 = vadd.f32 %v240, %v360
        %v373 = vadd.f32 %v240, %v363
        %v374 = vadd.f32 %v240, %v365
        %s375 = scalar_lea.vmem %s229, 72
        %v376 = vld [vmem:[%s375] sm:$0xf]
        %v377 = vld [vmem:[%s375 + $0x8] sm:$0xf]
        %v378 = vld [vmem:[%s375 + $0x10] sm:$0xf]
        %v379 = vld [vmem:[%s375 + $0x18] sm:$0xf]
        %v380 = vld [vmem:[%s375 + $0x20] sm:$0xf]
        %v381 = vld [vmem:[%s375 + $0x28] sm:$0xf]
        %v382 = vld [vmem:[%s375 + $0x30] sm:$0xf]
        %v383 = vld [vmem:[%s375 + $0x38] sm:$0xf]
        %s384 = scalar_lea.vmem %s233, 64
        %v385 = vld [vmem:[%s384] sm:$0xf]
        %v386 = vld [vmem:[%s384 + $0x4] sm:$0xf]
        %v387 = vld [vmem:[%s384 + $0x8] sm:$0xf]
        %v388 = vld [vmem:[%s384 + $0xc] sm:$0xf]
        %v389 = vld [vmem:[%s384 + $0x10] sm:$0xf]
        %v390 = vld [vmem:[%s384 + $0x14] sm:$0xf]
        %v391 = vld [vmem:[%s384 + $0x18] sm:$0xf]
        %v392 = vld [vmem:[%s384 + $0x1c] sm:$0xf]
        %v393 = vld [vmem:[%s384 + $0x20] sm:$0xf]
        %v394 = vld [vmem:[%s384 + $0x24] sm:$0xf]
        %v395 = vld [vmem:[%s384 + $0x28] sm:$0xf]
        %v396 = vld [vmem:[%s384 + $0x2c] sm:$0xf]
        %v397 = vld [vmem:[%s384 + $0x30] sm:$0xf]
        %v398 = vld [vmem:[%s384 + $0x34] sm:$0xf]
        %v399 = vld [vmem:[%s384 + $0x38] sm:$0xf]
        %v400 = vld [vmem:[%s384 + $0x3c] sm:$0xf]
        %v409 = vunpack.c.l.b16 %v376
        %v410 = vunpack.c.l.b16 %v377
        %v411 = vunpack.c.l.b16 %v378
        %v412 = vunpack.c.l.b16 %v379
        %v413 = vunpack.c.l.b16 %v380
        %v414 = vunpack.c.l.b16 %v381
        %v415 = vunpack.c.l.b16 %v382
        %v416 = vunpack.c.l.b16 %v383
        %v417 = vpack.c.b16 %v410, %v409
        %v418 = vpack.c.b16 %v412, %v411
        %v419 = vpack.c.b16 %v414, %v413
        %v420 = vpack.c.b16 %v416, %v415
        %v441 = vunpack.c.l.b16 %v385
        %v442 = vunpack.c.l.b16 %v386
        %v443 = vunpack.c.l.b16 %v387
        %v444 = vunpack.c.l.b16 %v388
        %v445 = vunpack.c.l.b16 %v389
        %v446 = vunpack.c.l.b16 %v390
        %v447 = vunpack.c.l.b16 %v391
        %v448 = vunpack.c.l.b16 %v392
        %v449 = vunpack.c.l.b16 %v393
        %v450 = vunpack.c.l.b16 %v394
        %v451 = vunpack.c.l.b16 %v395
        %v452 = vunpack.c.l.b16 %v396
        %v453 = vunpack.c.l.b16 %v397
        %v454 = vunpack.c.l.b16 %v398
        %v455 = vunpack.c.l.b16 %v399
        %v456 = vunpack.c.l.b16 %v400
        %v457 = vpack.c.b16 %v442, %v441
        %v458 = vpack.c.b16 %v444, %v443
        %v459 = vpack.c.b16 %v446, %v445
        %v460 = vpack.c.b16 %v448, %v447
        %v461 = vpack.c.b16 %v450, %v449
        %v462 = vpack.c.b16 %v452, %v451
        %v463 = vpack.c.b16 %v454, %v453
        %v464 = vpack.c.b16 %v456, %v455
        %473 = vmatpush.bf16.msra.mxu0 %v464
        %474 = vmatpush.bf16.msra.mxu0 %v463
        %475 = vmatpush.bf16.msra.mxu0 %v462
        %476 = vmatpush.bf16.msra.mxu0 %v461
        %477 = vmatpush.bf16.msra.mxu0 %v460
        %478 = vmatpush.bf16.msra.mxu0 %v459
        %479 = vmatpush.bf16.msra.mxu0 %v458
        %480 = vmatpush.bf16.msra.mxu0 %v457
        %481 = vmatmul.bf16.gmra.mxu0 %v417
        %v482 = vpop.f32.mrf.mxu0
        %v483 = vadd.f32 0.0, %v482
        %v484 = vpop.f32.mrf.mxu0
        %v485 = vadd.f32 0.0, %v484
        %486 = vmatmul.bf16.gmra.mxu0 %v418
        %v487 = vpop.f32.mrf.mxu0
        %v488 = vadd.f32 0.0, %v487
        %v489 = vpop.f32.mrf.mxu0
        %v490 = vadd.f32 0.0, %v489
        %491 = vmatmul.bf16.gmra.mxu0 %v419
        %v492 = vpop.f32.mrf.mxu0
        %v493 = vadd.f32 0.0, %v492
        %v494 = vpop.f32.mrf.mxu0
        %v495 = vadd.f32 0.0, %v494
        %496 = vmatmul.bf16.gmra.mxu0 %v420
        %v497 = vpop.f32.mrf.mxu0
        %v498 = vadd.f32 0.0, %v497
        %v499 = vpop.f32.mrf.mxu0
        %v500 = vadd.f32 0.0, %v499
        %501 = vdwg.mxu0
        %v502 = vadd.f32 %v367, %v483
        %v503 = vadd.f32 %v368, %v485
        %v504 = vadd.f32 %v369, %v488
        %v505 = vadd.f32 %v370, %v490
        %v506 = vadd.f32 %v371, %v493
        %v507 = vadd.f32 %v372, %v495
        %v508 = vadd.f32 %v373, %v498
        %v509 = vadd.f32 %v374, %v500
        %v510 = vld [vmem:[%s229] sm:$0xf]
        %v511 = vld [vmem:[%s229 + $0x4] sm:$0x1]
        %v512 = vld [vmem:[%s229 + $0x8] sm:$0xf]
        %v513 = vld [vmem:[%s229 + $0xc] sm:$0x1]
        %v514 = vld [vmem:[%s229 + $0x10] sm:$0xf]
        %v515 = vld [vmem:[%s229 + $0x14] sm:$0x1]
        %v516 = vld [vmem:[%s229 + $0x18] sm:$0xf]
        %v517 = vld [vmem:[%s229 + $0x1c] sm:$0x1]
        %v518 = vld [vmem:[%s229 + $0x20] sm:$0xf]
        %v519 = vld [vmem:[%s229 + $0x24] sm:$0x1]
        %v520 = vld [vmem:[%s229 + $0x28] sm:$0xf]
        %v521 = vld [vmem:[%s229 + $0x2c] sm:$0x1]
        %v522 = vld [vmem:[%s229 + $0x30] sm:$0xf]
        %v523 = vld [vmem:[%s229 + $0x34] sm:$0x1]
        %v524 = vld [vmem:[%s229 + $0x38] sm:$0xf]
        %v525 = vld [vmem:[%s229 + $0x3c] sm:$0x1]
        %vm526 = vsmask.f32 3328
        %vm527 = vsmask.f32 7440
        %vm528 = vmor %vm526, %vm527
        %v530 = vshrl.u32 %v510, 16
        %v532 = vrot.slane %v530, 4
        %v533 = vshll.u32 %v510, 16
        %v535 = vrot.slane %v533, 5
        %v536 = vor.u32 %v532, %v535
        %v537 = vrot.slane %v536, 4
        %v539 = vshll.u32 %v511, 16
        %v541 = vrot.slane %v539, 5
        %v542 = vsel %vm528, %v537, %v541
        %v544 = vshrl.u32 %v512, 16
        %v546 = vrot.slane %v544, 4
        %v547 = vshll.u32 %v512, 16
        %v549 = vrot.slane %v547, 5
        %v550 = vor.u32 %v546, %v549
        %v551 = vrot.slane %v550, 4
        %v553 = vshll.u32 %v513, 16
        %v555 = vrot.slane %v553, 5
        %v556 = vsel %vm528, %v551, %v555
        %v558 = vshrl.u32 %v514, 16
        %v560 = vrot.slane %v558, 4
        %v561 = vshll.u32 %v514, 16
        %v563 = vrot.slane %v561, 5
        %v564 = vor.u32 %v560, %v563
        %v565 = vrot.slane %v564, 4
        %v567 = vshll.u32 %v515, 16
        %v569 = vrot.slane %v567, 5
        %v570 = vsel %vm528, %v565, %v569
        %v572 = vshrl.u32 %v516, 16
        %v574 = vrot.slane %v572, 4
        %v575 = vshll.u32 %v516, 16
        %v577 = vrot.slane %v575, 5
        %v578 = vor.u32 %v574, %v577
        %v579 = vrot.slane %v578, 4
        %v581 = vshll.u32 %v517, 16
        %v583 = vrot.slane %v581, 5
        %v584 = vsel %vm528, %v579, %v583
        %v586 = vshrl.u32 %v518, 16
        %v588 = vrot.slane %v586, 4
        %v589 = vshll.u32 %v518, 16
        %v591 = vrot.slane %v589, 5
        %v592 = vor.u32 %v588, %v591
        %v593 = vrot.slane %v592, 4
        %v595 = vshll.u32 %v519, 16
        %v597 = vrot.slane %v595, 5
        %v598 = vsel %vm528, %v593, %v597
        %v600 = vshrl.u32 %v520, 16
        %v602 = vrot.slane %v600, 4
        %v603 = vshll.u32 %v520, 16
        %v605 = vrot.slane %v603, 5
        %v606 = vor.u32 %v602, %v605
        %v607 = vrot.slane %v606, 4
        %v609 = vshll.u32 %v521, 16
        %v611 = vrot.slane %v609, 5
        %v612 = vsel %vm528, %v607, %v611
        %v614 = vshrl.u32 %v522, 16
        %v616 = vrot.slane %v614, 4
        %v617 = vshll.u32 %v522, 16
        %v619 = vrot.slane %v617, 5
        %v620 = vor.u32 %v616, %v619
        %v621 = vrot.slane %v620, 4
        %v623 = vshll.u32 %v523, 16
        %v625 = vrot.slane %v623, 5
        %v626 = vsel %vm528, %v621, %v625
        %v628 = vshrl.u32 %v524, 16
        %v630 = vrot.slane %v628, 4
        %v631 = vshll.u32 %v524, 16
        %v633 = vrot.slane %v631, 5
        %v634 = vor.u32 %v630, %v633
        %v635 = vrot.slane %v634, 4
        %v637 = vshll.u32 %v525, 16
        %v639 = vrot.slane %v637, 5
        %v640 = vsel %vm528, %v635, %v639
        %s641 = scalar_lea.vmem %s233, 128
        %v642 = vld [vmem:[%s641] sm:$0xf]
        %v643 = vld [vmem:[%s641 + $0x4] sm:$0xf]
        %v644 = vld [vmem:[%s641 + $0x8] sm:$0xf]
        %v645 = vld [vmem:[%s641 + $0xc] sm:$0xf]
        %v646 = vld [vmem:[%s641 + $0x10] sm:$0xf]
        %v647 = vld [vmem:[%s641 + $0x14] sm:$0xf]
        %v648 = vld [vmem:[%s641 + $0x18] sm:$0xf]
        %v649 = vld [vmem:[%s641 + $0x1c] sm:$0xf]
        %v650 = vld [vmem:[%s641 + $0x20] sm:$0xf]
        %v651 = vld [vmem:[%s641 + $0x24] sm:$0xf]
        %v652 = vld [vmem:[%s641 + $0x28] sm:$0xf]
        %v653 = vld [vmem:[%s641 + $0x2c] sm:$0xf]
        %v654 = vld [vmem:[%s641 + $0x30] sm:$0xf]
        %v655 = vld [vmem:[%s641 + $0x34] sm:$0xf]
        %v656 = vld [vmem:[%s641 + $0x38] sm:$0xf]
        %v657 = vld [vmem:[%s641 + $0x3c] sm:$0xf]
        %v658 = vunpack.c.l.b16 %v542
        %v659 = vunpack.c.l.b16 %v556
        %v660 = vunpack.c.l.b16 %v570
        %v661 = vunpack.c.l.b16 %v584
        %v662 = vunpack.c.l.b16 %v598
        %v663 = vunpack.c.l.b16 %v612
        %v664 = vunpack.c.l.b16 %v626
        %v665 = vunpack.c.l.b16 %v640
        %v666 = vpack.c.b16 %v659, %v658
        %v667 = vpack.c.b16 %v661, %v660
        %v668 = vpack.c.b16 %v663, %v662
        %v669 = vpack.c.b16 %v665, %v664
        %v690 = vunpack.c.l.b16 %v642
        %v691 = vunpack.c.l.b16 %v643
        %v692 = vunpack.c.l.b16 %v644
        %v693 = vunpack.c.l.b16 %v645
        %v694 = vunpack.c.l.b16 %v646
        %v695 = vunpack.c.l.b16 %v647
        %v696 = vunpack.c.l.b16 %v648
        %v697 = vunpack.c.l.b16 %v649
        %v698 = vunpack.c.l.b16 %v650
        %v699 = vunpack.c.l.b16 %v651
        %v700 = vunpack.c.l.b16 %v652
        %v701 = vunpack.c.l.b16 %v653
        %v702 = vunpack.c.l.b16 %v654
        %v703 = vunpack.c.l.b16 %v655
        %v704 = vunpack.c.l.b16 %v656
        %v705 = vunpack.c.l.b16 %v657
        %v706 = vpack.c.b16 %v691, %v690
        %v707 = vpack.c.b16 %v693, %v692
        %v708 = vpack.c.b16 %v695, %v694
        %v709 = vpack.c.b16 %v697, %v696
        %v710 = vpack.c.b16 %v699, %v698
        %v711 = vpack.c.b16 %v701, %v700
        %v712 = vpack.c.b16 %v703, %v702
        %v713 = vpack.c.b16 %v705, %v704
        %722 = vmatpush.bf16.msra.mxu0 %v713
        %723 = vmatpush.bf16.msra.mxu0 %v712
        %724 = vmatpush.bf16.msra.mxu0 %v711
        %725 = vmatpush.bf16.msra.mxu0 %v710
        %726 = vmatpush.bf16.msra.mxu0 %v709
        %727 = vmatpush.bf16.msra.mxu0 %v708
        %728 = vmatpush.bf16.msra.mxu0 %v707
        %729 = vmatpush.bf16.msra.mxu0 %v706
        %730 = vmatmul.bf16.gmra.mxu0 %v666
        %v731 = vpop.f32.mrf.mxu0
        %v732 = vadd.f32 0.0, %v731
        %v733 = vpop.f32.mrf.mxu0
        %v734 = vadd.f32 0.0, %v733
        %735 = vmatmul.bf16.gmra.mxu0 %v667
        %v736 = vpop.f32.mrf.mxu0
        %v737 = vadd.f32 0.0, %v736
        %v738 = vpop.f32.mrf.mxu0
        %v739 = vadd.f32 0.0, %v738
        %740 = vmatmul.bf16.gmra.mxu0 %v668
        %v741 = vpop.f32.mrf.mxu0
        %v742 = vadd.f32 0.0, %v741
        %v743 = vpop.f32.mrf.mxu0
        %v744 = vadd.f32 0.0, %v743
        %745 = vmatmul.bf16.gmra.mxu0 %v669
        %v746 = vpop.f32.mrf.mxu0
        %v747 = vadd.f32 0.0, %v746
        %v748 = vpop.f32.mrf.mxu0
        %v749 = vadd.f32 0.0, %v748
        %750 = vdwg.mxu0
        %v751 = vadd.f32 %v502, %v732
        %v752 = vadd.f32 %v503, %v734
        %v753 = vadd.f32 %v504, %v737
        %v754 = vadd.f32 %v505, %v739
        %v755 = vadd.f32 %v506, %v742
        %v756 = vadd.f32 %v507, %v744
        %v757 = vadd.f32 %v508, %v747
        %v758 = vadd.f32 %v509, %v749
        %s759 = scalar_lea.vmem %s229, 144
        %v760 = vld [vmem:[%s759] sm:$0xf]
        %v761 = vld [vmem:[%s759 + $0x8] sm:$0xf]
        %v762 = vld [vmem:[%s759 + $0x10] sm:$0xf]
        %v763 = vld [vmem:[%s759 + $0x18] sm:$0xf]
        %v764 = vld [vmem:[%s759 + $0x20] sm:$0xf]
        %v765 = vld [vmem:[%s759 + $0x28] sm:$0xf]
        %v766 = vld [vmem:[%s759 + $0x30] sm:$0xf]
        %v767 = vld [vmem:[%s759 + $0x38] sm:$0xf]
        %s768 = scalar_lea.vmem %s233, 192
        %v769 = vld [vmem:[%s768] sm:$0xf]
        %v770 = vld [vmem:[%s768 + $0x4] sm:$0xf]
        %v771 = vld [vmem:[%s768 + $0x8] sm:$0xf]
        %v772 = vld [vmem:[%s768 + $0xc] sm:$0xf]
        %v773 = vld [vmem:[%s768 + $0x10] sm:$0xf]
        %v774 = vld [vmem:[%s768 + $0x14] sm:$0xf]
        %v775 = vld [vmem:[%s768 + $0x18] sm:$0xf]
        %v776 = vld [vmem:[%s768 + $0x1c] sm:$0xf]
        %v777 = vld [vmem:[%s768 + $0x20] sm:$0xf]
        %v778 = vld [vmem:[%s768 + $0x24] sm:$0xf]
        %v779 = vld [vmem:[%s768 + $0x28] sm:$0xf]
        %v780 = vld [vmem:[%s768 + $0x2c] sm:$0xf]
        %v781 = vld [vmem:[%s768 + $0x30] sm:$0xf]
        %v782 = vld [vmem:[%s768 + $0x34] sm:$0xf]
        %v783 = vld [vmem:[%s768 + $0x38] sm:$0xf]
        %v784 = vld [vmem:[%s768 + $0x3c] sm:$0xf]
        %v793 = vunpack.c.l.b16 %v760
        %v794 = vunpack.c.l.b16 %v761
        %v795 = vunpack.c.l.b16 %v762
        %v796 = vunpack.c.l.b16 %v763
        %v797 = vunpack.c.l.b16 %v764
        %v798 = vunpack.c.l.b16 %v765
        %v799 = vunpack.c.l.b16 %v766
        %v800 = vunpack.c.l.b16 %v767
        %v801 = vpack.c.b16 %v794, %v793
        %v802 = vpack.c.b16 %v796, %v795
        %v803 = vpack.c.b16 %v798, %v797
        %v804 = vpack.c.b16 %v800, %v799
        %v825 = vunpack.c.l.b16 %v769
        %v826 = vunpack.c.l.b16 %v770
        %v827 = vunpack.c.l.b16 %v771
        %v828 = vunpack.c.l.b16 %v772
        %v829 = vunpack.c.l.b16 %v773
        %v830 = vunpack.c.l.b16 %v774
        %v831 = vunpack.c.l.b16 %v775
        %v832 = vunpack.c.l.b16 %v776
        %v833 = vunpack.c.l.b16 %v777
        %v834 = vunpack.c.l.b16 %v778
        %v835 = vunpack.c.l.b16 %v779
        %v836 = vunpack.c.l.b16 %v780
        %v837 = vunpack.c.l.b16 %v781
        %v838 = vunpack.c.l.b16 %v782
        %v839 = vunpack.c.l.b16 %v783
        %v840 = vunpack.c.l.b16 %v784
        %v841 = vpack.c.b16 %v826, %v825
        %v842 = vpack.c.b16 %v828, %v827
        %v843 = vpack.c.b16 %v830, %v829
        %v844 = vpack.c.b16 %v832, %v831
        %v845 = vpack.c.b16 %v834, %v833
        %v846 = vpack.c.b16 %v836, %v835
        %v847 = vpack.c.b16 %v838, %v837
        %v848 = vpack.c.b16 %v840, %v839
        %857 = vmatpush.bf16.msra.mxu0 %v848
        %858 = vmatpush.bf16.msra.mxu0 %v847
        %859 = vmatpush.bf16.msra.mxu0 %v846
        %860 = vmatpush.bf16.msra.mxu0 %v845
        %861 = vmatpush.bf16.msra.mxu0 %v844
        %862 = vmatpush.bf16.msra.mxu0 %v843
        %863 = vmatpush.bf16.msra.mxu0 %v842
        %864 = vmatpush.bf16.msra.mxu0 %v841
        %865 = vmatmul.bf16.gmra.mxu0 %v801
        %v866 = vpop.f32.mrf.mxu0
        %v867 = vadd.f32 0.0, %v866
        %v868 = vpop.f32.mrf.mxu0
        %v869 = vadd.f32 0.0, %v868
        %870 = vmatmul.bf16.gmra.mxu0 %v802
        %v871 = vpop.f32.mrf.mxu0
        %v872 = vadd.f32 0.0, %v871
        %v873 = vpop.f32.mrf.mxu0
        %v874 = vadd.f32 0.0, %v873
        %875 = vmatmul.bf16.gmra.mxu0 %v803
        %v876 = vpop.f32.mrf.mxu0
        %v877 = vadd.f32 0.0, %v876
        %v878 = vpop.f32.mrf.mxu0
        %v879 = vadd.f32 0.0, %v878
        %880 = vmatmul.bf16.gmra.mxu0 %v804
        %v881 = vpop.f32.mrf.mxu0
        %v882 = vadd.f32 0.0, %v881
        %v883 = vpop.f32.mrf.mxu0
        %v884 = vadd.f32 0.0, %v883
        %885 = vdwg.mxu0
        %v886 = vadd.f32 %v751, %v867
        %v887 = vadd.f32 %v752, %v869
        %v888 = vadd.f32 %v753, %v872
        %v889 = vadd.f32 %v754, %v874
        %v890 = vadd.f32 %v755, %v877
        %v891 = vadd.f32 %v756, %v879
        %v892 = vadd.f32 %v757, %v882
        %v893 = vadd.f32 %v758, %v884
        %s894 = scalar_lea.vmem %s229, 216
        %v895 = vld [vmem:[%s894] sm:$0xf]
        %v896 = vld [vmem:[%s894 + $0x8] sm:$0xf]
        %v897 = vld [vmem:[%s894 + $0x10] sm:$0xf]
        %v898 = vld [vmem:[%s894 + $0x18] sm:$0xf]
        %v899 = vld [vmem:[%s894 + $0x20] sm:$0xf]
        %v900 = vld [vmem:[%s894 + $0x28] sm:$0xf]
        %v901 = vld [vmem:[%s894 + $0x30] sm:$0xf]
        %v902 = vld [vmem:[%s894 + $0x38] sm:$0xf]
        %s903 = scalar_lea.vmem %s233, 256
        %v904 = vld [vmem:[%s903] sm:$0xf]
        %v905 = vld [vmem:[%s903 + $0x4] sm:$0xf]
        %v906 = vld [vmem:[%s903 + $0x8] sm:$0xf]
        %v907 = vld [vmem:[%s903 + $0xc] sm:$0xf]
        %v908 = vld [vmem:[%s903 + $0x10] sm:$0xf]
        %v909 = vld [vmem:[%s903 + $0x14] sm:$0xf]
        %v910 = vld [vmem:[%s903 + $0x18] sm:$0xf]
        %v911 = vld [vmem:[%s903 + $0x1c] sm:$0xf]
        %v912 = vld [vmem:[%s903 + $0x20] sm:$0xf]
        %v913 = vld [vmem:[%s903 + $0x24] sm:$0xf]
        %v914 = vld [vmem:[%s903 + $0x28] sm:$0xf]
        %v915 = vld [vmem:[%s903 + $0x2c] sm:$0xf]
        %v916 = vld [vmem:[%s903 + $0x30] sm:$0xf]
        %v917 = vld [vmem:[%s903 + $0x34] sm:$0xf]
        %v918 = vld [vmem:[%s903 + $0x38] sm:$0xf]
        %v919 = vld [vmem:[%s903 + $0x3c] sm:$0xf]
        %v928 = vunpack.c.l.b16 %v895
        %v929 = vunpack.c.l.b16 %v896
        %v930 = vunpack.c.l.b16 %v897
        %v931 = vunpack.c.l.b16 %v898
        %v932 = vunpack.c.l.b16 %v899
        %v933 = vunpack.c.l.b16 %v900
        %v934 = vunpack.c.l.b16 %v901
        %v935 = vunpack.c.l.b16 %v902
        %v936 = vpack.c.b16 %v929, %v928
        %v937 = vpack.c.b16 %v931, %v930
        %v938 = vpack.c.b16 %v933, %v932
        %v939 = vpack.c.b16 %v935, %v934
        %v960 = vunpack.c.l.b16 %v904
        %v961 = vunpack.c.l.b16 %v905
        %v962 = vunpack.c.l.b16 %v906
        %v963 = vunpack.c.l.b16 %v907
        %v964 = vunpack.c.l.b16 %v908
        %v965 = vunpack.c.l.b16 %v909
        %v966 = vunpack.c.l.b16 %v910
        %v967 = vunpack.c.l.b16 %v911
        %v968 = vunpack.c.l.b16 %v912
        %v969 = vunpack.c.l.b16 %v913
        %v970 = vunpack.c.l.b16 %v914
        %v971 = vunpack.c.l.b16 %v915
        %v972 = vunpack.c.l.b16 %v916
        %v973 = vunpack.c.l.b16 %v917
        %v974 = vunpack.c.l.b16 %v918
        %v975 = vunpack.c.l.b16 %v919
        %v976 = vpack.c.b16 %v961, %v960
        %v977 = vpack.c.b16 %v963, %v962
        %v978 = vpack.c.b16 %v965, %v964
        %v979 = vpack.c.b16 %v967, %v966
        %v980 = vpack.c.b16 %v969, %v968
        %v981 = vpack.c.b16 %v971, %v970
        %v982 = vpack.c.b16 %v973, %v972
        %v983 = vpack.c.b16 %v975, %v974
        %992 = vmatpush.bf16.msra.mxu0 %v983
        %993 = vmatpush.bf16.msra.mxu0 %v982
        %994 = vmatpush.bf16.msra.mxu0 %v981
        %995 = vmatpush.bf16.msra.mxu0 %v980
        %996 = vmatpush.bf16.msra.mxu0 %v979
        %997 = vmatpush.bf16.msra.mxu0 %v978
        %998 = vmatpush.bf16.msra.mxu0 %v977
        %999 = vmatpush.bf16.msra.mxu0 %v976
        %1000 = vmatmul.bf16.gmra.mxu0 %v936
        %v1001 = vpop.f32.mrf.mxu0
        %v1002 = vadd.f32 0.0, %v1001
        %v1003 = vpop.f32.mrf.mxu0
        %v1004 = vadd.f32 0.0, %v1003
        %1005 = vmatmul.bf16.gmra.mxu0 %v937
        %v1006 = vpop.f32.mrf.mxu0
        %v1007 = vadd.f32 0.0, %v1006
        %v1008 = vpop.f32.mrf.mxu0
        %v1009 = vadd.f32 0.0, %v1008
        %1010 = vmatmul.bf16.gmra.mxu0 %v938
        %v1011 = vpop.f32.mrf.mxu0
        %v1012 = vadd.f32 0.0, %v1011
        %v1013 = vpop.f32.mrf.mxu0
        %v1014 = vadd.f32 0.0, %v1013
        %1015 = vmatmul.bf16.gmra.mxu0 %v939
        %v1016 = vpop.f32.mrf.mxu0
        %v1017 = vadd.f32 0.0, %v1016
        %v1018 = vpop.f32.mrf.mxu0
        %v1019 = vadd.f32 0.0, %v1018
        %1020 = vdwg.mxu0
        %v1021 = vadd.f32 %v886, %v1002
        %v1022 = vadd.f32 %v887, %v1004
        %v1023 = vadd.f32 %v888, %v1007
        %v1024 = vadd.f32 %v889, %v1009
        %v1025 = vadd.f32 %v890, %v1012
        %v1026 = vadd.f32 %v891, %v1014
        %v1027 = vadd.f32 %v892, %v1017
        %v1028 = vadd.f32 %v893, %v1019
        %v1029 = vld [vmem:[%s759] sm:$0xf]
        %v1030 = vld [vmem:[%s759 + $0x4] sm:$0x1]
        %v1031 = vld [vmem:[%s759 + $0x8] sm:$0xf]
        %v1032 = vld [vmem:[%s759 + $0xc] sm:$0x1]
        %v1033 = vld [vmem:[%s759 + $0x10] sm:$0xf]
        %v1034 = vld [vmem:[%s759 + $0x14] sm:$0x1]
        %v1035 = vld [vmem:[%s759 + $0x18] sm:$0xf]
        %v1036 = vld [vmem:[%s759 + $0x1c] sm:$0x1]
        %v1037 = vld [vmem:[%s759 + $0x20] sm:$0xf]
        %v1038 = vld [vmem:[%s759 + $0x24] sm:$0x1]
        %v1039 = vld [vmem:[%s759 + $0x28] sm:$0xf]
        %v1040 = vld [vmem:[%s759 + $0x2c] sm:$0x1]
        %v1041 = vld [vmem:[%s759 + $0x30] sm:$0xf]
        %v1042 = vld [vmem:[%s759 + $0x34] sm:$0x1]
        %v1043 = vld [vmem:[%s759 + $0x38] sm:$0xf]
        %v1044 = vld [vmem:[%s759 + $0x3c] sm:$0x1]
        %v1046 = vshrl.u32 %v1029, 16
        %v1048 = vrot.slane %v1046, 4
        %v1049 = vshll.u32 %v1029, 16
        %v1051 = vrot.slane %v1049, 5
        %v1052 = vor.u32 %v1048, %v1051
        %v1053 = vrot.slane %v1052, 4
        %v1055 = vshll.u32 %v1030, 16
        %v1057 = vrot.slane %v1055, 5
        %v1058 = vsel %vm528, %v1053, %v1057
        %v1060 = vshrl.u32 %v1031, 16
        %v1062 = vrot.slane %v1060, 4
        %v1063 = vshll.u32 %v1031, 16
        %v1065 = vrot.slane %v1063, 5
        %v1066 = vor.u32 %v1062, %v1065
        %v1067 = vrot.slane %v1066, 4
        %v1069 = vshll.u32 %v1032, 16
        %v1071 = vrot.slane %v1069, 5
        %v1072 = vsel %vm528, %v1067, %v1071
        %v1074 = vshrl.u32 %v1033, 16
        %v1076 = vrot.slane %v1074, 4
        %v1077 = vshll.u32 %v1033, 16
        %v1079 = vrot.slane %v1077, 5
        %v1080 = vor.u32 %v1076, %v1079
        %v1081 = vrot.slane %v1080, 4
        %v1083 = vshll.u32 %v1034, 16
        %v1085 = vrot.slane %v1083, 5
        %v1086 = vsel %vm528, %v1081, %v1085
        %v1088 = vshrl.u32 %v1035, 16
        %v1090 = vrot.slane %v1088, 4
        %v1091 = vshll.u32 %v1035, 16
        %v1093 = vrot.slane %v1091, 5
        %v1094 = vor.u32 %v1090, %v1093
        %v1095 = vrot.slane %v1094, 4
        %v1097 = vshll.u32 %v1036, 16
        %v1099 = vrot.slane %v1097, 5
        %v1100 = vsel %vm528, %v1095, %v1099
        %v1102 = vshrl.u32 %v1037, 16
        %v1104 = vrot.slane %v1102, 4
        %v1105 = vshll.u32 %v1037, 16
        %v1107 = vrot.slane %v1105, 5
        %v1108 = vor.u32 %v1104, %v1107
        %v1109 = vrot.slane %v1108, 4
        %v1111 = vshll.u32 %v1038, 16
        %v1113 = vrot.slane %v1111, 5
        %v1114 = vsel %vm528, %v1109, %v1113
        %v1116 = vshrl.u32 %v1039, 16
        %v1118 = vrot.slane %v1116, 4
        %v1119 = vshll.u32 %v1039, 16
        %v1121 = vrot.slane %v1119, 5
        %v1122 = vor.u32 %v1118, %v1121
        %v1123 = vrot.slane %v1122, 4
        %v1125 = vshll.u32 %v1040, 16
        %v1127 = vrot.slane %v1125, 5
        %v1128 = vsel %vm528, %v1123, %v1127
        %v1130 = vshrl.u32 %v1041, 16
        %v1132 = vrot.slane %v1130, 4
        %v1133 = vshll.u32 %v1041, 16
        %v1135 = vrot.slane %v1133, 5
        %v1136 = vor.u32 %v1132, %v1135
        %v1137 = vrot.slane %v1136, 4
        %v1139 = vshll.u32 %v1042, 16
        %v1141 = vrot.slane %v1139, 5
        %v1142 = vsel %vm528, %v1137, %v1141
        %v1144 = vshrl.u32 %v1043, 16
        %v1146 = vrot.slane %v1144, 4
        %v1147 = vshll.u32 %v1043, 16
        %v1149 = vrot.slane %v1147, 5
        %v1150 = vor.u32 %v1146, %v1149
        %v1151 = vrot.slane %v1150, 4
        %v1153 = vshll.u32 %v1044, 16
        %v1155 = vrot.slane %v1153, 5
        %v1156 = vsel %vm528, %v1151, %v1155
        %s1157 = scalar_lea.vmem %s233, 320
        %v1158 = vld [vmem:[%s1157] sm:$0xf]
        %v1159 = vld [vmem:[%s1157 + $0x4] sm:$0xf]
        %v1160 = vld [vmem:[%s1157 + $0x8] sm:$0xf]
        %v1161 = vld [vmem:[%s1157 + $0xc] sm:$0xf]
        %v1162 = vld [vmem:[%s1157 + $0x10] sm:$0xf]
        %v1163 = vld [vmem:[%s1157 + $0x14] sm:$0xf]
        %v1164 = vld [vmem:[%s1157 + $0x18] sm:$0xf]
        %v1165 = vld [vmem:[%s1157 + $0x1c] sm:$0xf]
        %v1166 = vld [vmem:[%s1157 + $0x20] sm:$0xf]
        %v1167 = vld [vmem:[%s1157 + $0x24] sm:$0xf]
        %v1168 = vld [vmem:[%s1157 + $0x28] sm:$0xf]
        %v1169 = vld [vmem:[%s1157 + $0x2c] sm:$0xf]
        %v1170 = vld [vmem:[%s1157 + $0x30] sm:$0xf]
        %v1171 = vld [vmem:[%s1157 + $0x34] sm:$0xf]
        %v1172 = vld [vmem:[%s1157 + $0x38] sm:$0xf]
        %v1173 = vld [vmem:[%s1157 + $0x3c] sm:$0xf]
        %v1174 = vunpack.c.l.b16 %v1058
        %v1175 = vunpack.c.l.b16 %v1072
        %v1176 = vunpack.c.l.b16 %v1086
        %v1177 = vunpack.c.l.b16 %v1100
        %v1178 = vunpack.c.l.b16 %v1114
        %v1179 = vunpack.c.l.b16 %v1128
        %v1180 = vunpack.c.l.b16 %v1142
        %v1181 = vunpack.c.l.b16 %v1156
        %v1182 = vpack.c.b16 %v1175, %v1174
        %v1183 = vpack.c.b16 %v1177, %v1176
        %v1184 = vpack.c.b16 %v1179, %v1178
        %v1185 = vpack.c.b16 %v1181, %v1180
        %v1206 = vunpack.c.l.b16 %v1158
        %v1207 = vunpack.c.l.b16 %v1159
        %v1208 = vunpack.c.l.b16 %v1160
        %v1209 = vunpack.c.l.b16 %v1161
        %v1210 = vunpack.c.l.b16 %v1162
        %v1211 = vunpack.c.l.b16 %v1163
        %v1212 = vunpack.c.l.b16 %v1164
        %v1213 = vunpack.c.l.b16 %v1165
        %v1214 = vunpack.c.l.b16 %v1166
        %v1215 = vunpack.c.l.b16 %v1167
        %v1216 = vunpack.c.l.b16 %v1168
        %v1217 = vunpack.c.l.b16 %v1169
        %v1218 = vunpack.c.l.b16 %v1170
        %v1219 = vunpack.c.l.b16 %v1171
        %v1220 = vunpack.c.l.b16 %v1172
        %v1221 = vunpack.c.l.b16 %v1173
        %v1222 = vpack.c.b16 %v1207, %v1206
        %v1223 = vpack.c.b16 %v1209, %v1208
        %v1224 = vpack.c.b16 %v1211, %v1210
        %v1225 = vpack.c.b16 %v1213, %v1212
        %v1226 = vpack.c.b16 %v1215, %v1214
        %v1227 = vpack.c.b16 %v1217, %v1216
        %v1228 = vpack.c.b16 %v1219, %v1218
        %v1229 = vpack.c.b16 %v1221, %v1220
        %1238 = vmatpush.bf16.msra.mxu0 %v1229
        %1239 = vmatpush.bf16.msra.mxu0 %v1228
        %1240 = vmatpush.bf16.msra.mxu0 %v1227
        %1241 = vmatpush.bf16.msra.mxu0 %v1226
        %1242 = vmatpush.bf16.msra.mxu0 %v1225
        %1243 = vmatpush.bf16.msra.mxu0 %v1224
        %1244 = vmatpush.bf16.msra.mxu0 %v1223
        %1245 = vmatpush.bf16.msra.mxu0 %v1222
        %1246 = vmatmul.bf16.gmra.mxu0 %v1182
        %v1247 = vpop.f32.mrf.mxu0
        %v1248 = vadd.f32 0.0, %v1247
        %v1249 = vpop.f32.mrf.mxu0
        %v1250 = vadd.f32 0.0, %v1249
        %1251 = vmatmul.bf16.gmra.mxu0 %v1183
        %v1252 = vpop.f32.mrf.mxu0
        %v1253 = vadd.f32 0.0, %v1252
        %v1254 = vpop.f32.mrf.mxu0
        %v1255 = vadd.f32 0.0, %v1254
        %1256 = vmatmul.bf16.gmra.mxu0 %v1184
        %v1257 = vpop.f32.mrf.mxu0
        %v1258 = vadd.f32 0.0, %v1257
        %v1259 = vpop.f32.mrf.mxu0
        %v1260 = vadd.f32 0.0, %v1259
        %1261 = vmatmul.bf16.gmra.mxu0 %v1185
        %v1262 = vpop.f32.mrf.mxu0
        %v1263 = vadd.f32 0.0, %v1262
        %v1264 = vpop.f32.mrf.mxu0
        %v1265 = vadd.f32 0.0, %v1264
        %1266 = vdwg.mxu0
        %v1267 = vadd.f32 %v1021, %v1248
        %v1268 = vadd.f32 %v1022, %v1250
        %v1269 = vadd.f32 %v1023, %v1253
        %v1270 = vadd.f32 %v1024, %v1255
        %v1271 = vadd.f32 %v1025, %v1258
        %v1272 = vadd.f32 %v1026, %v1260
        %v1273 = vadd.f32 %v1027, %v1263
        %v1274 = vadd.f32 %v1028, %v1265
        %s1275 = scalar_lea.vmem %s229, 8
        %v1276 = vld [vmem:[%s1275] sm:$0xf]
        %v1277 = vld [vmem:[%s1275 + $0x8] sm:$0xf]
        %v1278 = vld [vmem:[%s1275 + $0x10] sm:$0xf]
        %v1279 = vld [vmem:[%s1275 + $0x18] sm:$0xf]
        %v1280 = vld [vmem:[%s1275 + $0x20] sm:$0xf]
        %v1281 = vld [vmem:[%s1275 + $0x28] sm:$0xf]
        %v1282 = vld [vmem:[%s1275 + $0x30] sm:$0xf]
        %v1283 = vld [vmem:[%s1275 + $0x38] sm:$0xf]
        %s1284 = scalar_lea.vmem %s233, 384
        %v1285 = vld [vmem:[%s1284] sm:$0xf]
        %v1286 = vld [vmem:[%s1284 + $0x4] sm:$0xf]
        %v1287 = vld [vmem:[%s1284 + $0x8] sm:$0xf]
        %v1288 = vld [vmem:[%s1284 + $0xc] sm:$0xf]
        %v1289 = vld [vmem:[%s1284 + $0x10] sm:$0xf]
        %v1290 = vld [vmem:[%s1284 + $0x14] sm:$0xf]
        %v1291 = vld [vmem:[%s1284 + $0x18] sm:$0xf]
        %v1292 = vld [vmem:[%s1284 + $0x1c] sm:$0xf]
        %v1293 = vld [vmem:[%s1284 + $0x20] sm:$0xf]
        %v1294 = vld [vmem:[%s1284 + $0x24] sm:$0xf]
        %v1295 = vld [vmem:[%s1284 + $0x28] sm:$0xf]
        %v1296 = vld [vmem:[%s1284 + $0x2c] sm:$0xf]
        %v1297 = vld [vmem:[%s1284 + $0x30] sm:$0xf]
        %v1298 = vld [vmem:[%s1284 + $0x34] sm:$0xf]
        %v1299 = vld [vmem:[%s1284 + $0x38] sm:$0xf]
        %v1300 = vld [vmem:[%s1284 + $0x3c] sm:$0xf]
        %v1309 = vunpack.c.l.b16 %v1276
        %v1310 = vunpack.c.l.b16 %v1277
        %v1311 = vunpack.c.l.b16 %v1278
        %v1312 = vunpack.c.l.b16 %v1279
        %v1313 = vunpack.c.l.b16 %v1280
        %v1314 = vunpack.c.l.b16 %v1281
        %v1315 = vunpack.c.l.b16 %v1282
        %v1316 = vunpack.c.l.b16 %v1283
        %v1317 = vpack.c.b16 %v1310, %v1309
        %v1318 = vpack.c.b16 %v1312, %v1311
        %v1319 = vpack.c.b16 %v1314, %v1313
        %v1320 = vpack.c.b16 %v1316, %v1315
        %v1341 = vunpack.c.l.b16 %v1285
        %v1342 = vunpack.c.l.b16 %v1286
        %v1343 = vunpack.c.l.b16 %v1287
        %v1344 = vunpack.c.l.b16 %v1288
        %v1345 = vunpack.c.l.b16 %v1289
        %v1346 = vunpack.c.l.b16 %v1290
        %v1347 = vunpack.c.l.b16 %v1291
        %v1348 = vunpack.c.l.b16 %v1292
        %v1349 = vunpack.c.l.b16 %v1293
        %v1350 = vunpack.c.l.b16 %v1294
        %v1351 = vunpack.c.l.b16 %v1295
        %v1352 = vunpack.c.l.b16 %v1296
        %v1353 = vunpack.c.l.b16 %v1297
        %v1354 = vunpack.c.l.b16 %v1298
        %v1355 = vunpack.c.l.b16 %v1299
        %v1356 = vunpack.c.l.b16 %v1300
        %v1357 = vpack.c.b16 %v1342, %v1341
        %v1358 = vpack.c.b16 %v1344, %v1343
        %v1359 = vpack.c.b16 %v1346, %v1345
        %v1360 = vpack.c.b16 %v1348, %v1347
        %v1361 = vpack.c.b16 %v1350, %v1349
        %v1362 = vpack.c.b16 %v1352, %v1351
        %v1363 = vpack.c.b16 %v1354, %v1353
        %v1364 = vpack.c.b16 %v1356, %v1355
        %1373 = vmatpush.bf16.msra.mxu0 %v1364
        %1374 = vmatpush.bf16.msra.mxu0 %v1363
        %1375 = vmatpush.bf16.msra.mxu0 %v1362
        %1376 = vmatpush.bf16.msra.mxu0 %v1361
        %1377 = vmatpush.bf16.msra.mxu0 %v1360
        %1378 = vmatpush.bf16.msra.mxu0 %v1359
        %1379 = vmatpush.bf16.msra.mxu0 %v1358
        %1380 = vmatpush.bf16.msra.mxu0 %v1357
        %1381 = vmatmul.bf16.gmra.mxu0 %v1317
        %v1382 = vpop.f32.mrf.mxu0
        %v1383 = vadd.f32 0.0, %v1382
        %v1384 = vpop.f32.mrf.mxu0
        %v1385 = vadd.f32 0.0, %v1384
        %1386 = vmatmul.bf16.gmra.mxu0 %v1318
        %v1387 = vpop.f32.mrf.mxu0
        %v1388 = vadd.f32 0.0, %v1387
        %v1389 = vpop.f32.mrf.mxu0
        %v1390 = vadd.f32 0.0, %v1389
        %1391 = vmatmul.bf16.gmra.mxu0 %v1319
        %v1392 = vpop.f32.mrf.mxu0
        %v1393 = vadd.f32 0.0, %v1392
        %v1394 = vpop.f32.mrf.mxu0
        %v1395 = vadd.f32 0.0, %v1394
        %1396 = vmatmul.bf16.gmra.mxu0 %v1320
        %v1397 = vpop.f32.mrf.mxu0
        %v1398 = vadd.f32 0.0, %v1397
        %v1399 = vpop.f32.mrf.mxu0
        %v1400 = vadd.f32 0.0, %v1399
        %1401 = vdwg.mxu0
        %v1402 = vadd.f32 %v1267, %v1383
        %v1403 = vadd.f32 %v1268, %v1385
        %v1404 = vadd.f32 %v1269, %v1388
        %v1405 = vadd.f32 %v1270, %v1390
        %v1406 = vadd.f32 %v1271, %v1393
        %v1407 = vadd.f32 %v1272, %v1395
        %v1408 = vadd.f32 %v1273, %v1398
        %v1409 = vadd.f32 %v1274, %v1400
        %s1410 = scalar_lea.vmem %s229, 80
        %v1411 = vld [vmem:[%s1410] sm:$0xf]
        %v1412 = vld [vmem:[%s1410 + $0x8] sm:$0xf]
        %v1413 = vld [vmem:[%s1410 + $0x10] sm:$0xf]
        %v1414 = vld [vmem:[%s1410 + $0x18] sm:$0xf]
        %v1415 = vld [vmem:[%s1410 + $0x20] sm:$0xf]
        %v1416 = vld [vmem:[%s1410 + $0x28] sm:$0xf]
        %v1417 = vld [vmem:[%s1410 + $0x30] sm:$0xf]
        %v1418 = vld [vmem:[%s1410 + $0x38] sm:$0xf]
        %s1419 = scalar_lea.vmem %s233, 448
        %v1420 = vld [vmem:[%s1419] sm:$0xf]
        %v1421 = vld [vmem:[%s1419 + $0x4] sm:$0xf]
        %v1422 = vld [vmem:[%s1419 + $0x8] sm:$0xf]
        %v1423 = vld [vmem:[%s1419 + $0xc] sm:$0xf]
        %v1424 = vld [vmem:[%s1419 + $0x10] sm:$0xf]
        %v1425 = vld [vmem:[%s1419 + $0x14] sm:$0xf]
        %v1426 = vld [vmem:[%s1419 + $0x18] sm:$0xf]
        %v1427 = vld [vmem:[%s1419 + $0x1c] sm:$0xf]
        %v1428 = vld [vmem:[%s1419 + $0x20] sm:$0xf]
        %v1429 = vld [vmem:[%s1419 + $0x24] sm:$0xf]
        %v1430 = vld [vmem:[%s1419 + $0x28] sm:$0xf]
        %v1431 = vld [vmem:[%s1419 + $0x2c] sm:$0xf]
        %v1432 = vld [vmem:[%s1419 + $0x30] sm:$0xf]
        %v1433 = vld [vmem:[%s1419 + $0x34] sm:$0xf]
        %v1434 = vld [vmem:[%s1419 + $0x38] sm:$0xf]
        %v1435 = vld [vmem:[%s1419 + $0x3c] sm:$0xf]
        %v1444 = vunpack.c.l.b16 %v1411
        %v1445 = vunpack.c.l.b16 %v1412
        %v1446 = vunpack.c.l.b16 %v1413
        %v1447 = vunpack.c.l.b16 %v1414
        %v1448 = vunpack.c.l.b16 %v1415
        %v1449 = vunpack.c.l.b16 %v1416
        %v1450 = vunpack.c.l.b16 %v1417
        %v1451 = vunpack.c.l.b16 %v1418
        %v1452 = vpack.c.b16 %v1445, %v1444
        %v1453 = vpack.c.b16 %v1447, %v1446
        %v1454 = vpack.c.b16 %v1449, %v1448
        %v1455 = vpack.c.b16 %v1451, %v1450
        %v1476 = vunpack.c.l.b16 %v1420
        %v1477 = vunpack.c.l.b16 %v1421
        %v1478 = vunpack.c.l.b16 %v1422
        %v1479 = vunpack.c.l.b16 %v1423
        %v1480 = vunpack.c.l.b16 %v1424
        %v1481 = vunpack.c.l.b16 %v1425
        %v1482 = vunpack.c.l.b16 %v1426
        %v1483 = vunpack.c.l.b16 %v1427
        %v1484 = vunpack.c.l.b16 %v1428
        %v1485 = vunpack.c.l.b16 %v1429
        %v1486 = vunpack.c.l.b16 %v1430
        %v1487 = vunpack.c.l.b16 %v1431
        %v1488 = vunpack.c.l.b16 %v1432
        %v1489 = vunpack.c.l.b16 %v1433
        %v1490 = vunpack.c.l.b16 %v1434
        %v1491 = vunpack.c.l.b16 %v1435
        %v1492 = vpack.c.b16 %v1477, %v1476
        %v1493 = vpack.c.b16 %v1479, %v1478
        %v1494 = vpack.c.b16 %v1481, %v1480
        %v1495 = vpack.c.b16 %v1483, %v1482
        %v1496 = vpack.c.b16 %v1485, %v1484
        %v1497 = vpack.c.b16 %v1487, %v1486
        %v1498 = vpack.c.b16 %v1489, %v1488
        %v1499 = vpack.c.b16 %v1491, %v1490
        %1508 = vmatpush.bf16.msra.mxu0 %v1499
        %1509 = vmatpush.bf16.msra.mxu0 %v1498
        %1510 = vmatpush.bf16.msra.mxu0 %v1497
        %1511 = vmatpush.bf16.msra.mxu0 %v1496
        %1512 = vmatpush.bf16.msra.mxu0 %v1495
        %1513 = vmatpush.bf16.msra.mxu0 %v1494
        %1514 = vmatpush.bf16.msra.mxu0 %v1493
        %1515 = vmatpush.bf16.msra.mxu0 %v1492
        %1516 = vmatmul.bf16.gmra.mxu0 %v1452
        %v1517 = vpop.f32.mrf.mxu0
        %v1518 = vadd.f32 0.0, %v1517
        %v1519 = vpop.f32.mrf.mxu0
        %v1520 = vadd.f32 0.0, %v1519
        %1521 = vmatmul.bf16.gmra.mxu0 %v1453
        %v1522 = vpop.f32.mrf.mxu0
        %v1523 = vadd.f32 0.0, %v1522
        %v1524 = vpop.f32.mrf.mxu0
        %v1525 = vadd.f32 0.0, %v1524
        %1526 = vmatmul.bf16.gmra.mxu0 %v1454
        %v1527 = vpop.f32.mrf.mxu0
        %v1528 = vadd.f32 0.0, %v1527
        %v1529 = vpop.f32.mrf.mxu0
        %v1530 = vadd.f32 0.0, %v1529
        %1531 = vmatmul.bf16.gmra.mxu0 %v1455
        %v1532 = vpop.f32.mrf.mxu0
        %v1533 = vadd.f32 0.0, %v1532
        %v1534 = vpop.f32.mrf.mxu0
        %v1535 = vadd.f32 0.0, %v1534
        %1536 = vdwg.mxu0
        %v1537 = vadd.f32 %v1402, %v1518
        %v1538 = vadd.f32 %v1403, %v1520
        %v1539 = vadd.f32 %v1404, %v1523
        %v1540 = vadd.f32 %v1405, %v1525
        %v1541 = vadd.f32 %v1406, %v1528
        %v1542 = vadd.f32 %v1407, %v1530
        %v1543 = vadd.f32 %v1408, %v1533
        %v1544 = vadd.f32 %v1409, %v1535
        %v1545 = vld [vmem:[%s1275] sm:$0xf]
        %v1546 = vld [vmem:[%s1275 + $0x4] sm:$0x1]
        %v1547 = vld [vmem:[%s1275 + $0x8] sm:$0xf]
        %v1548 = vld [vmem:[%s1275 + $0xc] sm:$0x1]
        %v1549 = vld [vmem:[%s1275 + $0x10] sm:$0xf]
        %v1550 = vld [vmem:[%s1275 + $0x14] sm:$0x1]
        %v1551 = vld [vmem:[%s1275 + $0x18] sm:$0xf]
        %v1552 = vld [vmem:[%s1275 + $0x1c] sm:$0x1]
        %v1553 = vld [vmem:[%s1275 + $0x20] sm:$0xf]
        %v1554 = vld [vmem:[%s1275 + $0x24] sm:$0x1]
        %v1555 = vld [vmem:[%s1275 + $0x28] sm:$0xf]
        %v1556 = vld [vmem:[%s1275 + $0x2c] sm:$0x1]
        %v1557 = vld [vmem:[%s1275 + $0x30] sm:$0xf]
        %v1558 = vld [vmem:[%s1275 + $0x34] sm:$0x1]
        %v1559 = vld [vmem:[%s1275 + $0x38] sm:$0xf]
        %v1560 = vld [vmem:[%s1275 + $0x3c] sm:$0x1]
        %v1562 = vshrl.u32 %v1545, 16
        %v1564 = vrot.slane %v1562, 4
        %v1565 = vshll.u32 %v1545, 16
        %v1567 = vrot.slane %v1565, 5
        %v1568 = vor.u32 %v1564, %v1567
        %v1569 = vrot.slane %v1568, 4
        %v1571 = vshll.u32 %v1546, 16
        %v1573 = vrot.slane %v1571, 5
        %v1574 = vsel %vm528, %v1569, %v1573
        %v1576 = vshrl.u32 %v1547, 16
        %v1578 = vrot.slane %v1576, 4
        %v1579 = vshll.u32 %v1547, 16
        %v1581 = vrot.slane %v1579, 5
        %v1582 = vor.u32 %v1578, %v1581
        %v1583 = vrot.slane %v1582, 4
        %v1585 = vshll.u32 %v1548, 16
        %v1587 = vrot.slane %v1585, 5
        %v1588 = vsel %vm528, %v1583, %v1587
        %v1590 = vshrl.u32 %v1549, 16
        %v1592 = vrot.slane %v1590, 4
        %v1593 = vshll.u32 %v1549, 16
        %v1595 = vrot.slane %v1593, 5
        %v1596 = vor.u32 %v1592, %v1595
        %v1597 = vrot.slane %v1596, 4
        %v1599 = vshll.u32 %v1550, 16
        %v1601 = vrot.slane %v1599, 5
        %v1602 = vsel %vm528, %v1597, %v1601
        %v1604 = vshrl.u32 %v1551, 16
        %v1606 = vrot.slane %v1604, 4
        %v1607 = vshll.u32 %v1551, 16
        %v1609 = vrot.slane %v1607, 5
        %v1610 = vor.u32 %v1606, %v1609
        %v1611 = vrot.slane %v1610, 4
        %v1613 = vshll.u32 %v1552, 16
        %v1615 = vrot.slane %v1613, 5
        %v1616 = vsel %vm528, %v1611, %v1615
        %v1618 = vshrl.u32 %v1553, 16
        %v1620 = vrot.slane %v1618, 4
        %v1621 = vshll.u32 %v1553, 16
        %v1623 = vrot.slane %v1621, 5
        %v1624 = vor.u32 %v1620, %v1623
        %v1625 = vrot.slane %v1624, 4
        %v1627 = vshll.u32 %v1554, 16
        %v1629 = vrot.slane %v1627, 5
        %v1630 = vsel %vm528, %v1625, %v1629
        %v1632 = vshrl.u32 %v1555, 16
        %v1634 = vrot.slane %v1632, 4
        %v1635 = vshll.u32 %v1555, 16
        %v1637 = vrot.slane %v1635, 5
        %v1638 = vor.u32 %v1634, %v1637
        %v1639 = vrot.slane %v1638, 4
        %v1641 = vshll.u32 %v1556, 16
        %v1643 = vrot.slane %v1641, 5
        %v1644 = vsel %vm528, %v1639, %v1643
        %v1646 = vshrl.u32 %v1557, 16
        %v1648 = vrot.slane %v1646, 4
        %v1649 = vshll.u32 %v1557, 16
        %v1651 = vrot.slane %v1649, 5
        %v1652 = vor.u32 %v1648, %v1651
        %v1653 = vrot.slane %v1652, 4
        %v1655 = vshll.u32 %v1558, 16
        %v1657 = vrot.slane %v1655, 5
        %v1658 = vsel %vm528, %v1653, %v1657
        %v1660 = vshrl.u32 %v1559, 16
        %v1662 = vrot.slane %v1660, 4
        %v1663 = vshll.u32 %v1559, 16
        %v1665 = vrot.slane %v1663, 5
        %v1666 = vor.u32 %v1662, %v1665
        %v1667 = vrot.slane %v1666, 4
        %v1669 = vshll.u32 %v1560, 16
        %v1671 = vrot.slane %v1669, 5
        %v1672 = vsel %vm528, %v1667, %v1671
        %s1673 = scalar_lea.vmem %s233, 512
        %v1674 = vld [vmem:[%s1673] sm:$0xf]
        %v1675 = vld [vmem:[%s1673 + $0x4] sm:$0xf]
        %v1676 = vld [vmem:[%s1673 + $0x8] sm:$0xf]
        %v1677 = vld [vmem:[%s1673 + $0xc] sm:$0xf]
        %v1678 = vld [vmem:[%s1673 + $0x10] sm:$0xf]
        %v1679 = vld [vmem:[%s1673 + $0x14] sm:$0xf]
        %v1680 = vld [vmem:[%s1673 + $0x18] sm:$0xf]
        %v1681 = vld [vmem:[%s1673 + $0x1c] sm:$0xf]
        %v1682 = vld [vmem:[%s1673 + $0x20] sm:$0xf]
        %v1683 = vld [vmem:[%s1673 + $0x24] sm:$0xf]
        %v1684 = vld [vmem:[%s1673 + $0x28] sm:$0xf]
        %v1685 = vld [vmem:[%s1673 + $0x2c] sm:$0xf]
        %v1686 = vld [vmem:[%s1673 + $0x30] sm:$0xf]
        %v1687 = vld [vmem:[%s1673 + $0x34] sm:$0xf]
        %v1688 = vld [vmem:[%s1673 + $0x38] sm:$0xf]
        %v1689 = vld [vmem:[%s1673 + $0x3c] sm:$0xf]
        %v1690 = vunpack.c.l.b16 %v1574
        %v1691 = vunpack.c.l.b16 %v1588
        %v1692 = vunpack.c.l.b16 %v1602
        %v1693 = vunpack.c.l.b16 %v1616
        %v1694 = vunpack.c.l.b16 %v1630
        %v1695 = vunpack.c.l.b16 %v1644
        %v1696 = vunpack.c.l.b16 %v1658
        %v1697 = vunpack.c.l.b16 %v1672
        %v1698 = vpack.c.b16 %v1691, %v1690
        %v1699 = vpack.c.b16 %v1693, %v1692
        %v1700 = vpack.c.b16 %v1695, %v1694
        %v1701 = vpack.c.b16 %v1697, %v1696
        %v1722 = vunpack.c.l.b16 %v1674
        %v1723 = vunpack.c.l.b16 %v1675
        %v1724 = vunpack.c.l.b16 %v1676
        %v1725 = vunpack.c.l.b16 %v1677
        %v1726 = vunpack.c.l.b16 %v1678
        %v1727 = vunpack.c.l.b16 %v1679
        %v1728 = vunpack.c.l.b16 %v1680
        %v1729 = vunpack.c.l.b16 %v1681
        %v1730 = vunpack.c.l.b16 %v1682
        %v1731 = vunpack.c.l.b16 %v1683
        %v1732 = vunpack.c.l.b16 %v1684
        %v1733 = vunpack.c.l.b16 %v1685
        %v1734 = vunpack.c.l.b16 %v1686
        %v1735 = vunpack.c.l.b16 %v1687
        %v1736 = vunpack.c.l.b16 %v1688
        %v1737 = vunpack.c.l.b16 %v1689
        %v1738 = vpack.c.b16 %v1723, %v1722
        %v1739 = vpack.c.b16 %v1725, %v1724
        %v1740 = vpack.c.b16 %v1727, %v1726
        %v1741 = vpack.c.b16 %v1729, %v1728
        %v1742 = vpack.c.b16 %v1731, %v1730
        %v1743 = vpack.c.b16 %v1733, %v1732
        %v1744 = vpack.c.b16 %v1735, %v1734
        %v1745 = vpack.c.b16 %v1737, %v1736
        %1754 = vmatpush.bf16.msra.mxu0 %v1745
        %1755 = vmatpush.bf16.msra.mxu0 %v1744
        %1756 = vmatpush.bf16.msra.mxu0 %v1743
        %1757 = vmatpush.bf16.msra.mxu0 %v1742
        %1758 = vmatpush.bf16.msra.mxu0 %v1741
        %1759 = vmatpush.bf16.msra.mxu0 %v1740
        %1760 = vmatpush.bf16.msra.mxu0 %v1739
        %1761 = vmatpush.bf16.msra.mxu0 %v1738
        %1762 = vmatmul.bf16.gmra.mxu0 %v1698
        %v1763 = vpop.f32.mrf.mxu0
        %v1764 = vadd.f32 0.0, %v1763
        %v1765 = vpop.f32.mrf.mxu0
        %v1766 = vadd.f32 0.0, %v1765
        %1767 = vmatmul.bf16.gmra.mxu0 %v1699
        %v1768 = vpop.f32.mrf.mxu0
        %v1769 = vadd.f32 0.0, %v1768
        %v1770 = vpop.f32.mrf.mxu0
        %v1771 = vadd.f32 0.0, %v1770
        %1772 = vmatmul.bf16.gmra.mxu0 %v1700
        %v1773 = vpop.f32.mrf.mxu0
        %v1774 = vadd.f32 0.0, %v1773
        %v1775 = vpop.f32.mrf.mxu0
        %v1776 = vadd.f32 0.0, %v1775
        %1777 = vmatmul.bf16.gmra.mxu0 %v1701
        %v1778 = vpop.f32.mrf.mxu0
        %v1779 = vadd.f32 0.0, %v1778
        %v1780 = vpop.f32.mrf.mxu0
        %v1781 = vadd.f32 0.0, %v1780
        %1782 = vdwg.mxu0
        %v1783 = vadd.f32 %v1537, %v1764
        %v1784 = vadd.f32 %v1538, %v1766
        %v1785 = vadd.f32 %v1539, %v1769
        %v1786 = vadd.f32 %v1540, %v1771
        %v1787 = vadd.f32 %v1541, %v1774
        %v1788 = vadd.f32 %v1542, %v1776
        %v1789 = vadd.f32 %v1543, %v1779
        %v1790 = vadd.f32 %v1544, %v1781
        %1791 = vst [vmem:[%s220] sm:$0xff] %v1783
        %1792 = vst [vmem:[%s220 + $0x8] sm:$0xff] %v1784
        %1793 = vst [vmem:[%s220 + $0x10] sm:$0xff] %v1785
        %1794 = vst [vmem:[%s220 + $0x18] sm:$0xff] %v1786
        %1795 = vst [vmem:[%s220 + $0x20] sm:$0xff] %v1787
        %1796 = vst [vmem:[%s220 + $0x28] sm:$0xff] %v1788
        %1797 = vst [vmem:[%s220 + $0x30] sm:$0xff] %v1789
        %1798 = vst [vmem:[%s220 + $0x38] sm:$0xff] %v1790
        %s1799 = sand.u32 %s128, 1
        %s1800 = scalar_lea.sflag [#allocation3], %s1799
        %s1801 = sand.u32 %s128, 1
        %s1802 = smul.addr %s1801, 64
        %s1803 = scalar_lea.vmem [#allocation2], %s1802
        // Predicated region
        $region33: #{tpu_custom_call.1} parent=31 // pred_check
          %p1804 = pneg %p138
        $region34: #{tpu_custom_call.1} parent=31 // pred_check_branch
          %1806 = sbr.rel (%p1804) target = $region36
        $region35: #{tpu_custom_call.1} parent=31 // pred_region
          %s1807 = smul.u32 8, %s23
          %1809 = vsyncadd %s1800, 0
          %s1810 = sadd.s32 %s24, %s1807
          %s1811 = smul.addr %s22, 8
          %s1812 = sadd.s32 %s1810, %s1811
          %s1813 = smul.addr %s1812, 8
          %s1814 = scalar_lea.hbm %s3, %s1813
          %s1815 = sshll.u32 %s1803, 4
          %s1816 = int_to_ptr.vmem [resolvable:$true] %s1815
          %s1817 = sshll.u32 %s1814, 4
          %s1818 = int_to_ptr.hbm [resolvable:$true] %s1817
          %1823 = dma.vmem_to_hbm [thread:$0]  %s1816, 1024, %s1818, %s1800, 128, 128, 8
        $region36: #{tpu_custom_call.1} parent=31 // pred_fallthru
          _
      $region32: #{tpu_custom_call.1} parent=5 // pred_fallthru
        _
      %p1824 = scmp.le.s32.totalorder 2, %s12
      // Predicated region
      $region37: #{tpu_custom_call.1} parent=5 // pred_check
        %p1825 = pneg %p1824
      $region38: #{tpu_custom_call.1} parent=5 // pred_check_branch
        %1827 = sbr.rel (%p1825) target = $region40
      $region39: #{tpu_custom_call.1} parent=5 // pred_region
        %s1828 = ssub.s32 %s12, 2
        // Predicated region
        $region41: #{tpu_custom_call.1} parent=39 // pred_check
          %p1829 = pneg %p144
        $region42: #{tpu_custom_call.1} parent=39 // pred_check_branch
          %1831 = sbr.rel (%p1829) target = $region44
        $region43: #{tpu_custom_call.1} parent=39 // pred_region
          %s1832 = sand.u32 %s129, 1
          %s1833 = scalar_lea.sflag [#allocation3], %s1832
          %s1834 = sand.u32 %s129, 1
          %s1835 = smul.addr %s1834, 64
          %s1836 = scalar_lea.vmem [#allocation2], %s1835
          %1838 = dma.done %s1833, 1024
        $region44: #{tpu_custom_call.1} parent=39 // pred_fallthru
          _
      $region40: #{tpu_custom_call.1} parent=5 // pred_fallthru
        _
    $region6: #{tpu_custom_call.1} parent=1 // loop_footer
      %s16 = sadd.s32 1, %s12
    $region7: #{tpu_custom_call.1} parent=1 // loop_footer_branch
      %11 = sbr.rel target = $region3
    $region8: #{tpu_custom_call.1} parent=1 // loop_exit
      _
    %1839 = vsyncpa [#allocation3], 1
    %s1840 = scalar_lea.sflag [#allocation3], 1
    %1841 = vsyncpa %s1840, 1

</llo_original>
